<compile_context>
chip_gen: v6e
topology: v6e:2x2x1
jax: 0.10.0
libtpu: 0.0.40
codegen_flags: <defaults>
</compile_context>

<pallas_src>
import math
import functools

import jax
import jax.numpy as jnp
from jax.experimental import pallas as pl
from jax.experimental.pallas import tpu as pltpu


VMEM_LIMIT = 48 * 1024 * 1024  # fits v7x's 64 MiB physical VMEM with headroom


def _pick_tile(dim, target, align):
    """Largest multiple of `align` <= target that divides dim; else full dim (always legal)."""
    if dim <= target:
        return dim
    t = (target // align) * align
    while t >= align:
        if dim % t == 0:
            return t
        t -= align
    return dim


# ----------------------------------------------------------------------------- kernels

def _ln_linear_kernel(x_ref, g_ref, bln_ref, w_ref, b_ref, o_ref, *, relu, eps, d):
    """LayerNorm(rows of x) fused with x_n @ w + b (+ optional ReLU)."""
    x = x_ref[...].astype(jnp.float32)                         # (tm, D)
    mean = jnp.mean(x, axis=-1, keepdims=True)
    var = jnp.sum((x - mean) ** 2, axis=-1, keepdims=True) * (1.0 / (d - 1))  # unbiased
    inv = pl.reciprocal(jnp.sqrt(var) + eps, approx=True)      # EUP, free slot
    xn = g_ref[...].astype(jnp.float32) * (x - mean) * inv + bln_ref[...].astype(jnp.float32)
    y = jnp.dot(xn.astype(w_ref.dtype), w_ref[...], preferred_element_type=jnp.float32)
    y = y + b_ref[...].astype(jnp.float32)
    if relu:
        y = jnp.maximum(y, 0.0)
    o_ref[...] = y.astype(o_ref.dtype)


def ln_linear_pallas(x2d, ln_a, ln_b, w, b, *, relu=False, eps=1e-6):
    """out = LN(x2d) @ w + b   ; x2d: (M, D), w: (D, N)."""
    M, D = x2d.shape
    D2, N = w.shape
    assert D == D2
    tm = _pick_tile(M, 256, 8)
    tn = _pick_tile(N, 512, 128)
    kernel = functools.partial(_ln_linear_kernel, relu=relu, eps=eps, d=D)
    itemsize = x2d.dtype.itemsize
    return pl.pallas_call(
        kernel,
        out_shape=jax.ShapeDtypeStruct((M, N), x2d.dtype),
        grid_spec=pltpu.PrefetchScalarGridSpec(
            num_scalar_prefetch=0,
            grid=(M // tm, N // tn),
            in_specs=[
                pl.BlockSpec((tm, D), lambda i, j: (i, 0)),
                pl.BlockSpec((1, D), lambda i, j: (0, 0)),
                pl.BlockSpec((1, D), lambda i, j: (0, 0)),
                pl.BlockSpec((D, tn), lambda i, j: (0, j)),
                pl.BlockSpec((1, tn), lambda i, j: (0, j)),
            ],
            out_specs=pl.BlockSpec((tm, tn), lambda i, j: (i, j)),
        ),
        compiler_params=pltpu.CompilerParams(
            dimension_semantics=("parallel", "parallel"),
            vmem_limit_bytes=VMEM_LIMIT),
        cost_estimate=pl.CostEstimate(
            flops=2 * M * N * D + 8 * M * D,
            transcendentals=M,
            bytes_accessed=(M * D + D * N + M * N + 2 * D + N) * itemsize),
    )(x2d, ln_a.reshape(1, D), ln_b.reshape(1, D), w, b.reshape(1, N))


def _linear_residual_kernel(x_ref, w_ref, b_ref, r_ref, o_ref, acc_ref, *, relu):
    """K-tiled matmul with f32 accumulator; bias + residual fused into the epilogue."""
    @pl.when(pl.program_id(2) == 0)
    def _():
        acc_ref[...] = jnp.zeros_like(acc_ref)

    acc_ref[...] += jnp.dot(x_ref[...], w_ref[...], preferred_element_type=jnp.float32)

    @pl.when(pl.program_id(2) == pl.num_programs(2) - 1)
    def _():
        y = acc_ref[...] + b_ref[...].astype(jnp.float32) + r_ref[...].astype(jnp.float32)
        if relu:
            y = jnp.maximum(y, 0.0)
        o_ref[...] = y.astype(o_ref.dtype)


def linear_residual_pallas(x2d, w, b, res2d, *, relu=False):
    """out = x2d @ w + b + res2d ; x2d: (M, K), w: (K, N), res2d: (M, N)."""
    M, K = x2d.shape
    K2, N = w.shape
    assert K == K2
    tm = _pick_tile(M, 256, 8)
    tn = _pick_tile(N, 256, 128)
    tk = _pick_tile(K, 512, 128)
    kernel = functools.partial(_linear_residual_kernel, relu=relu)
    itemsize = x2d.dtype.itemsize
    return pl.pallas_call(
        kernel,
        out_shape=jax.ShapeDtypeStruct((M, N), x2d.dtype),
        grid_spec=pltpu.PrefetchScalarGridSpec(
            num_scalar_prefetch=0,
            grid=(M // tm, N // tn, K // tk),
            in_specs=[
                pl.BlockSpec((tm, tk), lambda i, j, k: (i, k)),
                pl.BlockSpec((tk, tn), lambda i, j, k: (k, j)),
                pl.BlockSpec((1, tn), lambda i, j, k: (0, j)),
                pl.BlockSpec((tm, tn), lambda i, j, k: (i, j)),
            ],
            out_specs=pl.BlockSpec((tm, tn), lambda i, j, k: (i, j)),
            scratch_shapes=[pltpu.VMEM((tm, tn), jnp.float32)],
        ),
        compiler_params=pltpu.CompilerParams(
            dimension_semantics=("parallel", "parallel", "arbitrary"),
            vmem_limit_bytes=VMEM_LIMIT),
        cost_estimate=pl.CostEstimate(
            flops=2 * M * N * K,
            transcendentals=0,
            bytes_accessed=(M * K + K * N + 2 * M * N + N) * itemsize),
    )(x2d, w, b.reshape(1, N), res2d)


def _attention_kernel(qkv_ref, m_ref, o_ref, *, n_heads, dk, d_model):
    """All heads of one batch element. 1/sqrt(dk) is pre-folded into the Q projection."""
    y = qkv_ref[...]                                # (S, 3*D)
    m = m_ref[...]                                  # (1, S) key-padding mask
    neg = jnp.float32(-1e9)
    for h in range(n_heads):                        # static unroll over heads
        q = y[:, h * dk:(h + 1) * dk]                                  # (S, dk)
        k = y[:, d_model + h * dk: d_model + (h + 1) * dk]             # (S, dk)
        v = y[:, 2 * d_model + h * dk: 2 * d_model + (h + 1) * dk]     # (S, dk)
        # contract last dims of q and k -> no materialized k.T
        s = jax.lax.dot_general(q, k, (((1,), (1,)), ((), ())),
                                preferred_element_type=jnp.float32)    # (S, S)
        s = jnp.where(m == 0, neg, s)
        s = s - jnp.max(s, axis=-1, keepdims=True)
        e = jnp.exp(s)
        p = e * pl.reciprocal(jnp.sum(e, axis=-1, keepdims=True), approx=True)
        o = jnp.dot(p.astype(v.dtype), v, preferred_element_type=jnp.float32)
        # lane-dense (S, D) output block; per-head static column slab
        o_ref[:, h * dk:(h + 1) * dk] = o.astype(o_ref.dtype)


def attention_pallas(qkv, mask, *, n_heads):
    """qkv: (B, S, 3*D) fused projections; mask: (B, 1, 1, S) int32 -> (B, S, D)."""
    B, S, D3 = qkv.shape
    D = D3 // 3
    dk = D // n_heads
    kernel = functools.partial(_attention_kernel, n_heads=n_heads, dk=dk, d_model=D)
    return pl.pallas_call(
        kernel,
        out_shape=jax.ShapeDtypeStruct((B, S, D), qkv.dtype),
        grid_spec=pltpu.PrefetchScalarGridSpec(
            num_scalar_prefetch=0,
            grid=(B,),
            in_specs=[
                pl.BlockSpec((pl.Squeezed(), S, D3), lambda b: (b, 0, 0)),
                pl.BlockSpec((pl.Squeezed(), pl.Squeezed(), 1, S), lambda b: (b, 0, 0, 0)),
            ],
            out_specs=pl.BlockSpec((pl.Squeezed(), S, D), lambda b: (b, 0, 0)),
        ),
        compiler_params=pltpu.CompilerParams(
            dimension_semantics=("parallel",),
            vmem_limit_bytes=VMEM_LIMIT),
        cost_estimate=pl.CostEstimate(
            flops=4 * B * n_heads * S * S * dk,
            transcendentals=B * n_heads * S * S,
            bytes_accessed=(B * S * (D3 + D) + B * S) * qkv.dtype.itemsize),
    )(qkv, mask)


def _layernorm_kernel(x_ref, a_ref, b_ref, o_ref, *, eps, d):
    x = x_ref[...].astype(jnp.float32)                          # (tm, D)
    mean = jnp.mean(x, axis=-1, keepdims=True)
    var = jnp.sum((x - mean) ** 2, axis=-1, keepdims=True) * (1.0 / (d - 1))  # unbiased
    inv = pl.reciprocal(jnp.sqrt(var) + eps, approx=True)
    y = a_ref[...].astype(jnp.float32) * (x - mean) * inv + b_ref[...].astype(jnp.float32)
    o_ref[...] = y.astype(o_ref.dtype)


def layernorm_pallas(x, alpha, bias, eps=1e-6):
    """Final LayerNormalization, row-tiled over flattened (B*S) rows."""
    B, S, D = x.shape
    M = B * S
    x2d = x.reshape(M, D)
    tm = _pick_tile(M, 512, 8)
    kernel = functools.partial(_layernorm_kernel, eps=eps, d=D)
    y = pl.pallas_call(
        kernel,
        out_shape=jax.ShapeDtypeStruct((M, D), x.dtype),
        grid_spec=pltpu.PrefetchScalarGridSpec(
            num_scalar_prefetch=0,
            grid=(M // tm,),
            in_specs=[
                pl.BlockSpec((tm, D), lambda i: (i, 0)),
                pl.BlockSpec((1, D), lambda i: (0, 0)),
                pl.BlockSpec((1, D), lambda i: (0, 0)),
            ],
            out_specs=pl.BlockSpec((tm, D), lambda i: (i, 0)),
        ),
        compiler_params=pltpu.CompilerParams(
            dimension_semantics=("parallel",),
            vmem_limit_bytes=VMEM_LIMIT),
    )(x2d, alpha.reshape(1, D), bias.reshape(1, D))
    return y.reshape(B, S, D)


# ----------------------------------------------------------------------------- model glue

def encoder_forward(x, src_mask, params, n_heads):
    B, S, D = x.shape
    dk = D // n_heads
    scale = 1.0 / math.sqrt(dk)
    if src_mask is None:
        src_mask = jnp.ones((B, 1, 1, S), jnp.int32)
    M = B * S
    x2d = x.reshape(M, D)
    zero_d = jnp.zeros((D,), x.dtype)        # attention projections carry no bias
    for p in params["layers"]:
        # ---- self-attention sublayer:  x = x + Wo( MHA( LN1(x) ) )
        # fuse Q/K/V weights into one (D, 3D) matmul; fold 1/sqrt(dk) into Wq (free)
        wqkv = jnp.concatenate([p["wq"] * scale, p["wk"], p["wv"]], axis=1)
        bqkv = jnp.zeros((3 * D,), x.dtype)
        qkv = ln_linear_pallas(x2d, p["ln1_a"], p["ln1_b"], wqkv, bqkv)          # (M, 3D)
        attn = attention_pallas(qkv.reshape(B, S, 3 * D), src_mask, n_heads=n_heads)  # (B,S,D)
        x2d = linear_residual_pallas(attn.reshape(M, D), p["wo"], zero_d, x2d)   # +residual fused

        # ---- feed-forward sublayer:  x = x + W2( relu( W1( LN2(x) ) + b1 ) ) + b2
        h = ln_linear_pallas(x2d, p["ln2_a"], p["ln2_b"], p["w1"], p["b1"], relu=True)
        x2d = linear_residual_pallas(h, p["w2"], p["b2"], x2d)                   # +residual fused

    # output = self.norm(x)
    return layernorm_pallas(x2d.reshape(B, S, D), params["norm_a"], params["norm_b"])


def init_params(key, n_layers, d_model, d_ff):
    layers = []
    for _ in range(n_layers):
        key, k0, k1, k2, k3, k4, k5 = jax.random.split(key, 7)
        layers.append({
            "wq": (jax.random.normal(k0, (d_model, d_model)) * 0.02).astype(jnp.float32),
            "wk": (jax.random.normal(k1, (d_model, d_model)) * 0.02).astype(jnp.float32),
            "wv": (jax.random.normal(k2, (d_model, d_model)) * 0.02).astype(jnp.float32),
            "wo": (jax.random.normal(k3, (d_model, d_model)) * 0.02).astype(jnp.float32),
            "w1": (jax.random.normal(k4, (d_model, d_ff)) * 0.02).astype(jnp.float32),
            "b1": jnp.zeros((d_ff,), jnp.float32),
            "w2": (jax.random.normal(k5, (d_ff, d_model)) * 0.02).astype(jnp.float32),
            "b2": jnp.zeros((d_model,), jnp.float32),
            "ln1_a": jnp.ones((d_model,), jnp.float32),
            "ln1_b": jnp.zeros((d_model,), jnp.float32),
            "ln2_a": jnp.ones((d_model,), jnp.float32),
            "ln2_b": jnp.zeros((d_model,), jnp.float32),
        })
    return {
        "layers": layers,
        "norm_a": jnp.ones((d_model,), jnp.float32),
        "norm_b": jnp.zeros((d_model,), jnp.float32),
    }


if __name__ == "__main__":
    B, S, D, H, DFF, NLAYERS = 2, 8, 32, 4, 64, 2

    key = jax.random.PRNGKey(0)
    key, kx = jax.random.split(key)
    x = jax.random.normal(kx, (B, S, D), dtype=jnp.float32)

    # src_mask: (B, 1, 1, S); mask out the last two positions of batch element 1.
    src_mask = jnp.ones((B, 1, 1, S), dtype=jnp.int32)
    src_mask = src_mask.at[1, 0, 0, S - 2:].set(0)

    params = init_params(key, NLAYERS, D, DFF)

    fwd = jax.jit(functools.partial(encoder_forward, n_heads=H))
    out = fwd(x, src_mask, params)
    out = jax.block_until_ready(out)
    assert out.shape == (B, S, D)
    assert bool(jnp.all(jnp.isfinite(out)))
    print("KERNEL_OK")
</pallas_src>

<mosaic_0001>
module attributes {stable_mosaic.version = 11 : i64} {
  func.func @_ln_linear_kernel(%arg0: i32, %arg1: i32, %arg2: memref<16x32xf32, #tpu.memory_space<vmem>>, %arg3: memref<1x32xf32, #tpu.memory_space<vmem>>, %arg4: memref<1x32xf32, #tpu.memory_space<vmem>>, %arg5: memref<32x96xf32, #tpu.memory_space<vmem>>, %arg6: memref<1x96xf32, #tpu.memory_space<vmem>>, %arg7: memref<16x96xf32, #tpu.memory_space<vmem>>) attributes {dimension_semantics = [#tpu.dimension_semantics<parallel>, #tpu.dimension_semantics<parallel>], iteration_bounds = array<i64: 1, 1>, scalar_prefetch = 0 : i64, scratch_operands = 0 : i64, tpu.core_type = #tpu.core_type<tc>, window_params = [{transform_indices = @transform_0, window_bounds = array<i64: 16, 32>}, {pipeline_mode = #tpu.pipeline_mode<synchronous>, transform_indices = @transform_1, window_bounds = array<i64: 1, 32>}, {pipeline_mode = #tpu.pipeline_mode<synchronous>, transform_indices = @transform_2, window_bounds = array<i64: 1, 32>}, {transform_indices = @transform_3, window_bounds = array<i64: 32, 96>}, {transform_indices = @transform_4, window_bounds = array<i64: 1, 96>}, {transform_indices = @transform_5, window_bounds = array<i64: 16, 96>}]} {
    %c0 = arith.constant 0 : index
    %c0_0 = arith.constant 0 : index
    %0 = vector.load %arg2[%c0, %c0_0] : memref<16x32xf32, #tpu.memory_space<vmem>>, vector<16x32xf32>
    %cst = arith.constant dense<0.000000e+00> : vector<16xf32>
    %1 = vector.multi_reduction <add>, %0, %cst [1] : vector<16x32xf32> to vector<16xf32>
    %2 = vector.shape_cast %1 : vector<16xf32> to vector<16x1xf32>
    %cst_1 = arith.constant 3.200000e+01 : f32
    %3 = vector.broadcast %cst_1 : f32 to vector<16x1xf32>
    %4 = arith.divf %2, %3 : vector<16x1xf32>
    %5 = vector.broadcast %4 : vector<16x1xf32> to vector<16x32xf32>
    %6 = arith.subf %0, %5 : vector<16x32xf32>
    %7 = arith.mulf %6, %6 : vector<16x32xf32>
    %cst_2 = arith.constant dense<0.000000e+00> : vector<16xf32>
    %8 = vector.multi_reduction <add>, %7, %cst_2 [1] : vector<16x32xf32> to vector<16xf32>
    %9 = vector.shape_cast %8 : vector<16xf32> to vector<16x1xf32>
    %cst_3 = arith.constant 0.0322580636 : f32
    %10 = vector.broadcast %cst_3 : f32 to vector<16x1xf32>
    %11 = arith.mulf %9, %10 : vector<16x1xf32>
    %12 = math.sqrt %11 : vector<16x1xf32>
    %cst_4 = arith.constant 9.99999997E-7 : f32
    %13 = vector.broadcast %cst_4 : f32 to vector<16x1xf32>
    %14 = arith.addf %12, %13 : vector<16x1xf32>
    %15 = tpu.reciprocal %14 {approx = true} : vector<16x1xf32> -> vector<16x1xf32>
    %c0_5 = arith.constant 0 : index
    %c0_6 = arith.constant 0 : index
    %16 = vector.load %arg3[%c0_5, %c0_6] : memref<1x32xf32, #tpu.memory_space<vmem>>, vector<1x32xf32>
    %17 = vector.broadcast %4 : vector<16x1xf32> to vector<16x32xf32>
    %18 = arith.subf %0, %17 : vector<16x32xf32>
    %19 = vector.broadcast %16 : vector<1x32xf32> to vector<16x32xf32>
    %20 = arith.mulf %19, %18 : vector<16x32xf32>
    %21 = vector.broadcast %15 : vector<16x1xf32> to vector<16x32xf32>
    %22 = arith.mulf %20, %21 : vector<16x32xf32>
    %c0_7 = arith.constant 0 : index
    %c0_8 = arith.constant 0 : index
    %23 = vector.load %arg4[%c0_7, %c0_8] : memref<1x32xf32, #tpu.memory_space<vmem>>, vector<1x32xf32>
    %24 = vector.broadcast %23 : vector<1x32xf32> to vector<16x32xf32>
    %25 = arith.addf %22, %24 : vector<16x32xf32>
    %c0_9 = arith.constant 0 : index
    %c0_10 = arith.constant 0 : index
    %26 = vector.load %arg5[%c0_9, %c0_10] : memref<32x96xf32, #tpu.memory_space<vmem>>, vector<32x96xf32>
    %cst_11 = arith.constant dense<0.000000e+00> : vector<16x96xf32>
    %27 = tpu.matmul %25, %26, %cst_11 {dimension_numbers = #tpu.dot_dimension_numbers<[1], [0], [0], [1], [0, 0, 1, 1], [], []>} : vector<16x32xf32>, vector<32x96xf32>, vector<16x96xf32> -> vector<16x96xf32>
    %c0_12 = arith.constant 0 : index
    %c0_13 = arith.constant 0 : index
    %28 = vector.load %arg6[%c0_12, %c0_13] : memref<1x96xf32, #tpu.memory_space<vmem>>, vector<1x96xf32>
    %29 = vector.broadcast %28 : vector<1x96xf32> to vector<16x96xf32>
    %30 = arith.addf %27, %29 : vector<16x96xf32>
    %c0_14 = arith.constant 0 : index
    %c0_15 = arith.constant 0 : index
    %31 = vector.load %arg7[%c0_14, %c0_15] : memref<16x96xf32, #tpu.memory_space<vmem>>, vector<16x96xf32>
    tpu.vector_store %arg7[%c0_14, %c0_15], %30 {strides = array<i32>} : memref<16x96xf32, #tpu.memory_space<vmem>>, vector<16x96xf32>,
    return
  }
  func.func @transform_0(%arg0: i32, %arg1: i32) -> (i32, i32) {
    %c0_i32 = arith.constant 0 : i32
    %c0_i32_0 = arith.constant 0 : i32
    return %arg0, %c0_i32 : i32, i32
  }
  func.func @transform_1(%arg0: i32, %arg1: i32) -> (i32, i32) {
    %c0_i32 = arith.constant 0 : i32
    %c0_i32_0 = arith.constant 0 : i32
    %c0_i32_1 = arith.constant 0 : i32
    return %c0_i32, %c0_i32_0 : i32, i32
  }
  func.func @transform_2(%arg0: i32, %arg1: i32) -> (i32, i32) {
    %c0_i32 = arith.constant 0 : i32
    %c0_i32_0 = arith.constant 0 : i32
    %c0_i32_1 = arith.constant 0 : i32
    return %c0_i32, %c0_i32_0 : i32, i32
  }
  func.func @transform_3(%arg0: i32, %arg1: i32) -> (i32, i32) {
    %c0_i32 = arith.constant 0 : i32
    %c0_i32_0 = arith.constant 0 : i32
    return %c0_i32, %arg1 : i32, i32
  }
  func.func @transform_4(%arg0: i32, %arg1: i32) -> (i32, i32) {
    %c0_i32 = arith.constant 0 : i32
    %c0_i32_0 = arith.constant 0 : i32
    return %c0_i32, %arg1 : i32, i32
  }
  func.func @transform_5(%arg0: i32, %arg1: i32) -> (i32, i32) {
    %c0_i32 = arith.constant 0 : i32
    return %arg0, %arg1 : i32, i32
  }
}

module attributes {stable_mosaic.version = 11 : i64} {
  func.func @_linear_residual_kernel(%arg0: i32, %arg1: i32, %arg2: i32, %arg3: memref<16x32xf32, #tpu.memory_space<vmem>>, %arg4: memref<32x32xf32, #tpu.memory_space<vmem>>, %arg5: memref<1x32xf32, #tpu.memory_space<vmem>>, %arg6: memref<16x32xf32, #tpu.memory_space<vmem>>, %arg7: memref<16x32xf32, #tpu.memory_space<vmem>>, %arg8: memref<16x32xf32, #tpu.memory_space<vmem>>) attributes {dimension_semantics = [#tpu.dimension_semantics<parallel>, #tpu.dimension_semantics<parallel>, #tpu.dimension_semantics<arbitrary>], iteration_bounds = array<i64: 1, 1, 1>, scalar_prefetch = 0 : i64, scratch_operands = 1 : i64, tpu.core_type = #tpu.core_type<tc>, window_params = [{transform_indices = @transform_0, window_bounds = array<i64: 16, 32>}, {transform_indices = @transform_1, window_bounds = array<i64: 32, 32>}, {transform_indices = @transform_2, window_bounds = array<i64: 1, 32>}, {transform_indices = @transform_3, window_bounds = array<i64: 16, 32>}, {transform_indices = @transform_4, window_bounds = array<i64: 16, 32>}]} {
    %c0_i32 = arith.constant 0 : i32
    %0 = arith.cmpi eq, %arg2, %c0_i32 : i32
    %1 = arith.extui %0 : i1 to i32
    %c0_i32_0 = arith.constant 0 : i32
    %2 = arith.cmpi ne, %1, %c0_i32_0 : i32
    scf.if %2 {
      %cst_10 = arith.constant 0.000000e+00 : f32
      %12 = vector.broadcast %cst_10 : f32 to vector<16x32xf32>
      %c0_11 = arith.constant 0 : index
      %c0_12 = arith.constant 0 : index
      %13 = vector.load %arg8[%c0_11, %c0_12] : memref<16x32xf32, #tpu.memory_space<vmem>>, vector<16x32xf32>
      tpu.vector_store %arg8[%c0_11, %c0_12], %12 {strides = array<i32>} : memref<16x32xf32, #tpu.memory_space<vmem>>, vector<16x32xf32>,
    } else {
    }
    %c0 = arith.constant 0 : index
    %c0_1 = arith.constant 0 : index
    %3 = vector.load %arg8[%c0, %c0_1] : memref<16x32xf32, #tpu.memory_space<vmem>>, vector<16x32xf32>
    %c0_2 = arith.constant 0 : index
    %c0_3 = arith.constant 0 : index
    %4 = vector.load %arg3[%c0_2, %c0_3] : memref<16x32xf32, #tpu.memory_space<vmem>>, vector<16x32xf32>
    %c0_4 = arith.constant 0 : index
    %c0_5 = arith.constant 0 : index
    %5 = vector.load %arg4[%c0_4, %c0_5] : memref<32x32xf32, #tpu.memory_space<vmem>>, vector<32x32xf32>
    %cst = arith.constant dense<0.000000e+00> : vector<16x32xf32>
    %6 = tpu.matmul %4, %5, %cst {dimension_numbers = #tpu.dot_dimension_numbers<[1], [0], [0], [1], [0, 0, 1, 1], [], []>} : vector<16x32xf32>, vector<32x32xf32>, vector<16x32xf32> -> vector<16x32xf32>
    %7 = arith.addf %3, %6 : vector<16x32xf32>
    %c0_6 = arith.constant 0 : index
    %c0_7 = arith.constant 0 : index
    %8 = vector.load %arg8[%c0_6, %c0_7] : memref<16x32xf32, #tpu.memory_space<vmem>>, vector<16x32xf32>
    tpu.vector_store %arg8[%c0_6, %c0_7], %7 {strides = array<i32>} : memref<16x32xf32, #tpu.memory_space<vmem>>, vector<16x32xf32>,
    %c0_i32_8 = arith.constant 0 : i32
    %9 = arith.cmpi eq, %arg2, %c0_i32_8 : i32
    %10 = arith.extui %9 : i1 to i32
    %c0_i32_9 = arith.constant 0 : i32
    %11 = arith.cmpi ne, %10, %c0_i32_9 : i32
    scf.if %11 {
      %c0_10 = arith.constant 0 : index
      %c0_11 = arith.constant 0 : index
      %12 = vector.load %arg8[%c0_10, %c0_11] : memref<16x32xf32, #tpu.memory_space<vmem>>, vector<16x32xf32>
      %c0_12 = arith.constant 0 : index
      %c0_13 = arith.constant 0 : index
      %13 = vector.load %arg5[%c0_12, %c0_13] : memref<1x32xf32, #tpu.memory_space<vmem>>, vector<1x32xf32>
      %14 = vector.broadcast %13 : vector<1x32xf32> to vector<16x32xf32>
      %15 = arith.addf %12, %14 : vector<16x32xf32>
      %c0_14 = arith.constant 0 : index
      %c0_15 = arith.constant 0 : index
      %16 = vector.load %arg6[%c0_14, %c0_15] : memref<16x32xf32, #tpu.memory_space<vmem>>, vector<16x32xf32>
      %17 = arith.addf %15, %16 : vector<16x32xf32>
      %c0_16 = arith.constant 0 : index
      %c0_17 = arith.constant 0 : index
      %18 = vector.load %arg7[%c0_16, %c0_17] : memref<16x32xf32, #tpu.memory_space<vmem>>, vector<16x32xf32>
      tpu.vector_store %arg7[%c0_16, %c0_17], %17 {strides = array<i32>} : memref<16x32xf32, #tpu.memory_space<vmem>>, vector<16x32xf32>,
    } else {
    }
    return
  }
  func.func @transform_0(%arg0: i32, %arg1: i32, %arg2: i32) -> (i32, i32) {
    %c0_i32 = arith.constant 0 : i32
    return %arg0, %arg2 : i32, i32
  }
  func.func @transform_1(%arg0: i32, %arg1: i32, %arg2: i32) -> (i32, i32) {
    %c0_i32 = arith.constant 0 : i32
    return %arg2, %arg1 : i32, i32
  }
  func.func @transform_2(%arg0: i32, %arg1: i32, %arg2: i32) -> (i32, i32) {
    %c0_i32 = arith.constant 0 : i32
    %c0_i32_0 = arith.constant 0 : i32
    return %c0_i32, %arg1 : i32, i32
  }
  func.func @transform_3(%arg0: i32, %arg1: i32, %arg2: i32) -> (i32, i32) {
    %c0_i32 = arith.constant 0 : i32
    return %arg0, %arg1 : i32, i32
  }
  func.func @transform_4(%arg0: i32, %arg1: i32, %arg2: i32) -> (i32, i32) {
    %c0_i32 = arith.constant 0 : i32
    return %arg0, %arg1 : i32, i32
  }
}

module attributes {stable_mosaic.version = 11 : i64} {
  func.func @_attention_kernel(%arg0: i32, %arg1: memref<1x8x96xf32, #tpu.memory_space<vmem>>, %arg2: memref<1x1x1x8xi32, #tpu.memory_space<vmem>>, %arg3: memref<1x8x32xf32, #tpu.memory_space<vmem>>) attributes {dimension_semantics = [#tpu.dimension_semantics<parallel>], iteration_bounds = array<i64: 2>, scalar_prefetch = 0 : i64, scratch_operands = 0 : i64, tpu.core_type = #tpu.core_type<tc>, window_params = [{transform_indices = @transform_0, window_bounds = array<i64: 1, 8, 96>}, {transform_indices = @transform_1, window_bounds = array<i64: 1, 1, 1, 8>}, {transform_indices = @transform_2, window_bounds = array<i64: 1, 8, 32>}]} {
    %c0 = arith.constant 0 : index
    %c0_0 = arith.constant 0 : index
    %c0_1 = arith.constant 0 : index
    %0 = vector.load %arg1[%c0, %c0_0, %c0_1] : memref<1x8x96xf32, #tpu.memory_space<vmem>>, vector<1x8x96xf32>
    %1 = vector.shape_cast %0 : vector<1x8x96xf32> to vector<8x96xf32>
    %c0_2 = arith.constant 0 : index
    %c0_3 = arith.constant 0 : index
    %c0_4 = arith.constant 0 : index
    %c0_5 = arith.constant 0 : index
    %2 = vector.load %arg2[%c0_2, %c0_3, %c0_4, %c0_5] : memref<1x1x1x8xi32, #tpu.memory_space<vmem>>, vector<1x1x1x8xi32>
    %3 = vector.shape_cast %2 : vector<1x1x1x8xi32> to vector<1x8xi32>
    %4 = vector.extract_strided_slice %1 {offsets = [0, 0], sizes = [8, 8], strides = [1, 1]} : vector<8x96xf32> to vector<8x8xf32>
    %5 = vector.extract_strided_slice %1 {offsets = [0, 32], sizes = [8, 8], strides = [1, 1]} : vector<8x96xf32> to vector<8x8xf32>
    %6 = vector.extract_strided_slice %1 {offsets = [0, 64], sizes = [8, 8], strides = [1, 1]} : vector<8x96xf32> to vector<8x8xf32>
    %cst = arith.constant dense<0.000000e+00> : vector<8x8xf32>
    %7 = tpu.matmul %4, %5, %cst {dimension_numbers = #tpu.dot_dimension_numbers<[1], [1], [0], [0], [0, 0, 1, 0], [], []>} : vector<8x8xf32>, vector<8x8xf32>, vector<8x8xf32> -> vector<8x8xf32>
    %c0_i32 = arith.constant 0 : i32
    %8 = vector.broadcast %c0_i32 : i32 to vector<1x8xi32>
    %9 = arith.cmpi eq, %3, %8 : vector<1x8xi32>
    %cst_6 = arith.constant -1.000000e+09 : f32
    %10 = vector.shape_cast %9 : vector<1x8xi1> to vector<1x8xi1>
    %11 = vector.broadcast %10 : vector<1x8xi1> to vector<8x8xi1>
    %12 = vector.broadcast %cst_6 : f32 to vector<8x8xf32>
    %13 = arith.select %11, %12, %7 : vector<8x8xi1>, vector<8x8xf32>
    %cst_7 = arith.constant dense<0xFF800000> : vector<8xf32>
    %14 = vector.multi_reduction <maximumf>, %13, %cst_7 [1] : vector<8x8xf32> to vector<8xf32>
    %15 = vector.shape_cast %14 : vector<8xf32> to vector<8x1xf32>
    %16 = vector.broadcast %15 : vector<8x1xf32> to vector<8x8xf32>
    %17 = arith.subf %13, %16 : vector<8x8xf32>
    %18 = math.exp %17 : vector<8x8xf32>
    %cst_8 = arith.constant dense<0.000000e+00> : vector<8xf32>
    %19 = vector.multi_reduction <add>, %18, %cst_8 [1] : vector<8x8xf32> to vector<8xf32>
    %20 = vector.shape_cast %19 : vector<8xf32> to vector<8x1xf32>
    %21 = tpu.reciprocal %20 {approx = true} : vector<8x1xf32> -> vector<8x1xf32>
    %22 = vector.broadcast %21 : vector<8x1xf32> to vector<8x8xf32>
    %23 = arith.mulf %18, %22 : vector<8x8xf32>
    %cst_9 = arith.constant dense<0.000000e+00> : vector<8x8xf32>
    %24 = tpu.matmul %23, %6, %cst_9 {dimension_numbers = #tpu.dot_dimension_numbers<[1], [0], [0], [1], [0, 0, 1, 1], [], []>} : vector<8x8xf32>, vector<8x8xf32>, vector<8x8xf32> -> vector<8x8xf32>
    %c0_10 = arith.constant 0 : index
    %c0_11 = arith.constant 0 : index
    %c0_12 = arith.constant 0 : index
    %25 = vector.load %arg3[%c0_10, %c0_11, %c0_12] : memref<1x8x32xf32, #tpu.memory_space<vmem>>, vector<1x8x8xf32>
    %26 = vector.shape_cast %25 : vector<1x8x8xf32> to vector<8x8xf32>
    %27 = vector.shape_cast %24 : vector<8x8xf32> to vector<1x8x8xf32>
    tpu.vector_store %arg3[%c0_10, %c0_11, %c0_12], %27 {strides = array<i32>} : memref<1x8x32xf32, #tpu.memory_space<vmem>>, vector<1x8x8xf32>,
    %28 = vector.extract_strided_slice %1 {offsets = [0, 8], sizes = [8, 8], strides = [1, 1]} : vector<8x96xf32> to vector<8x8xf32>
    %29 = vector.extract_strided_slice %1 {offsets = [0, 40], sizes = [8, 8], strides = [1, 1]} : vector<8x96xf32> to vector<8x8xf32>
    %30 = vector.extract_strided_slice %1 {offsets = [0, 72], sizes = [8, 8], strides = [1, 1]} : vector<8x96xf32> to vector<8x8xf32>
    %cst_13 = arith.constant dense<0.000000e+00> : vector<8x8xf32>
    %31 = tpu.matmul %28, %29, %cst_13 {dimension_numbers = #tpu.dot_dimension_numbers<[1], [1], [0], [0], [0, 0, 1, 0], [], []>} : vector<8x8xf32>, vector<8x8xf32>, vector<8x8xf32> -> vector<8x8xf32>
    %c0_i32_14 = arith.constant 0 : i32
    %32 = vector.broadcast %c0_i32_14 : i32 to vector<1x8xi32>
    %33 = arith.cmpi eq, %3, %32 : vector<1x8xi32>
    %cst_15 = arith.constant -1.000000e+09 : f32
    %34 = vector.shape_cast %33 : vector<1x8xi1> to vector<1x8xi1>
    %35 = vector.broadcast %34 : vector<1x8xi1> to vector<8x8xi1>
    %36 = vector.broadcast %cst_15 : f32 to vector<8x8xf32>
    %37 = arith.select %35, %36, %31 : vector<8x8xi1>, vector<8x8xf32>
    %cst_16 = arith.constant dense<0xFF800000> : vector<8xf32>
    %38 = vector.multi_reduction <maximumf>, %37, %cst_16 [1] : vector<8x8xf32> to vector<8xf32>
    %39 = vector.shape_cast %38 : vector<8xf32> to vector<8x1xf32>
    %40 = vector.broadcast %39 : vector<8x1xf32> to vector<8x8xf32>
    %41 = arith.subf %37, %40 : vector<8x8xf32>
    %42 = math.exp %41 : vector<8x8xf32>
    %cst_17 = arith.constant dense<0.000000e+00> : vector<8xf32>
    %43 = vector.multi_reduction <add>, %42, %cst_17 [1] : vector<8x8xf32> to vector<8xf32>
    %44 = vector.shape_cast %43 : vector<8xf32> to vector<8x1xf32>
    %45 = tpu.reciprocal %44 {approx = true} : vector<8x1xf32> -> vector<8x1xf32>
    %46 = vector.broadcast %45 : vector<8x1xf32> to vector<8x8xf32>
    %47 = arith.mulf %42, %46 : vector<8x8xf32>
    %cst_18 = arith.constant dense<0.000000e+00> : vector<8x8xf32>
    %48 = tpu.matmul %47, %30, %cst_18 {dimension_numbers = #tpu.dot_dimension_numbers<[1], [0], [0], [1], [0, 0, 1, 1], [], []>} : vector<8x8xf32>, vector<8x8xf32>, vector<8x8xf32> -> vector<8x8xf32>
    %c0_19 = arith.constant 0 : index
    %c0_20 = arith.constant 0 : index
    %c8 = arith.constant 8 : index
    %49 = vector.load %arg3[%c0_19, %c0_20, %c8] : memref<1x8x32xf32, #tpu.memory_space<vmem>>, vector<1x8x8xf32>
    %50 = vector.shape_cast %49 : vector<1x8x8xf32> to vector<8x8xf32>
    %51 = vector.shape_cast %48 : vector<8x8xf32> to vector<1x8x8xf32>
    tpu.vector_store %arg3[%c0_19, %c0_20, %c8], %51 {strides = array<i32>} : memref<1x8x32xf32, #tpu.memory_space<vmem>>, vector<1x8x8xf32>,
    %52 = vector.extract_strided_slice %1 {offsets = [0, 16], sizes = [8, 8], strides = [1, 1]} : vector<8x96xf32> to vector<8x8xf32>
    %53 = vector.extract_strided_slice %1 {offsets = [0, 48], sizes = [8, 8], strides = [1, 1]} : vector<8x96xf32> to vector<8x8xf32>
    %54 = vector.extract_strided_slice %1 {offsets = [0, 80], sizes = [8, 8], strides = [1, 1]} : vector<8x96xf32> to vector<8x8xf32>
    %cst_21 = arith.constant dense<0.000000e+00> : vector<8x8xf32>
    %55 = tpu.matmul %52, %53, %cst_21 {dimension_numbers = #tpu.dot_dimension_numbers<[1], [1], [0], [0], [0, 0, 1, 0], [], []>} : vector<8x8xf32>, vector<8x8xf32>, vector<8x8xf32> -> vector<8x8xf32>
    %c0_i32_22 = arith.constant 0 : i32
    %56 = vector.broadcast %c0_i32_22 : i32 to vector<1x8xi32>
    %57 = arith.cmpi eq, %3, %56 : vector<1x8xi32>
    %cst_23 = arith.constant -1.000000e+09 : f32
    %58 = vector.shape_cast %57 : vector<1x8xi1> to vector<1x8xi1>
    %59 = vector.broadcast %58 : vector<1x8xi1> to vector<8x8xi1>
    %60 = vector.broadcast %cst_23 : f32 to vector<8x8xf32>
    %61 = arith.select %59, %60, %55 : vector<8x8xi1>, vector<8x8xf32>
    %cst_24 = arith.constant dense<0xFF800000> : vector<8xf32>
    %62 = vector.multi_reduction <maximumf>, %61, %cst_24 [1] : vector<8x8xf32> to vector<8xf32>
    %63 = vector.shape_cast %62 : vector<8xf32> to vector<8x1xf32>
    %64 = vector.broadcast %63 : vector<8x1xf32> to vector<8x8xf32>
    %65 = arith.subf %61, %64 : vector<8x8xf32>
    %66 = math.exp %65 : vector<8x8xf32>
    %cst_25 = arith.constant dense<0.000000e+00> : vector<8xf32>
    %67 = vector.multi_reduction <add>, %66, %cst_25 [1] : vector<8x8xf32> to vector<8xf32>
    %68 = vector.shape_cast %67 : vector<8xf32> to vector<8x1xf32>
    %69 = tpu.reciprocal %68 {approx = true} : vector<8x1xf32> -> vector<8x1xf32>
    %70 = vector.broadcast %69 : vector<8x1xf32> to vector<8x8xf32>
    %71 = arith.mulf %66, %70 : vector<8x8xf32>
    %cst_26 = arith.constant dense<0.000000e+00> : vector<8x8xf32>
    %72 = tpu.matmul %71, %54, %cst_26 {dimension_numbers = #tpu.dot_dimension_numbers<[1], [0], [0], [1], [0, 0, 1, 1], [], []>} : vector<8x8xf32>, vector<8x8xf32>, vector<8x8xf32> -> vector<8x8xf32>
    %c0_27 = arith.constant 0 : index
    %c0_28 = arith.constant 0 : index
    %c16 = arith.constant 16 : index
    %73 = vector.load %arg3[%c0_27, %c0_28, %c16] : memref<1x8x32xf32, #tpu.memory_space<vmem>>, vector<1x8x8xf32>
    %74 = vector.shape_cast %73 : vector<1x8x8xf32> to vector<8x8xf32>
    %75 = vector.shape_cast %72 : vector<8x8xf32> to vector<1x8x8xf32>
    tpu.vector_store %arg3[%c0_27, %c0_28, %c16], %75 {strides = array<i32>} : memref<1x8x32xf32, #tpu.memory_space<vmem>>, vector<1x8x8xf32>,
    %76 = vector.extract_strided_slice %1 {offsets = [0, 24], sizes = [8, 8], strides = [1, 1]} : vector<8x96xf32> to vector<8x8xf32>
    %77 = vector.extract_strided_slice %1 {offsets = [0, 56], sizes = [8, 8], strides = [1, 1]} : vector<8x96xf32> to vector<8x8xf32>
    %78 = vector.extract_strided_slice %1 {offsets = [0, 88], sizes = [8, 8], strides = [1, 1]} : vector<8x96xf32> to vector<8x8xf32>
    %cst_29 = arith.constant dense<0.000000e+00> : vector<8x8xf32>
    %79 = tpu.matmul %76, %77, %cst_29 {dimension_numbers = #tpu.dot_dimension_numbers<[1], [1], [0], [0], [0, 0, 1, 0], [], []>} : vector<8x8xf32>, vector<8x8xf32>, vector<8x8xf32> -> vector<8x8xf32>
    %c0_i32_30 = arith.constant 0 : i32
    %80 = vector.broadcast %c0_i32_30 : i32 to vector<1x8xi32>
    %81 = arith.cmpi eq, %3, %80 : vector<1x8xi32>
    %cst_31 = arith.constant -1.000000e+09 : f32
    %82 = vector.shape_cast %81 : vector<1x8xi1> to vector<1x8xi1>
    %83 = vector.broadcast %82 : vector<1x8xi1> to vector<8x8xi1>
    %84 = vector.broadcast %cst_31 : f32 to vector<8x8xf32>
    %85 = arith.select %83, %84, %79 : vector<8x8xi1>, vector<8x8xf32>
    %cst_32 = arith.constant dense<0xFF800000> : vector<8xf32>
    %86 = vector.multi_reduction <maximumf>, %85, %cst_32 [1] : vector<8x8xf32> to vector<8xf32>
    %87 = vector.shape_cast %86 : vector<8xf32> to vector<8x1xf32>
    %88 = vector.broadcast %87 : vector<8x1xf32> to vector<8x8xf32>
    %89 = arith.subf %85, %88 : vector<8x8xf32>
    %90 = math.exp %89 : vector<8x8xf32>
    %cst_33 = arith.constant dense<0.000000e+00> : vector<8xf32>
    %91 = vector.multi_reduction <add>, %90, %cst_33 [1] : vector<8x8xf32> to vector<8xf32>
    %92 = vector.shape_cast %91 : vector<8xf32> to vector<8x1xf32>
    %93 = tpu.reciprocal %92 {approx = true} : vector<8x1xf32> -> vector<8x1xf32>
    %94 = vector.broadcast %93 : vector<8x1xf32> to vector<8x8xf32>
    %95 = arith.mulf %90, %94 : vector<8x8xf32>
    %cst_34 = arith.constant dense<0.000000e+00> : vector<8x8xf32>
    %96 = tpu.matmul %95, %78, %cst_34 {dimension_numbers = #tpu.dot_dimension_numbers<[1], [0], [0], [1], [0, 0, 1, 1], [], []>} : vector<8x8xf32>, vector<8x8xf32>, vector<8x8xf32> -> vector<8x8xf32>
    %c0_35 = arith.constant 0 : index
    %c0_36 = arith.constant 0 : index
    %c24 = arith.constant 24 : index
    %97 = vector.load %arg3[%c0_35, %c0_36, %c24] : memref<1x8x32xf32, #tpu.memory_space<vmem>>, vector<1x8x8xf32>
    %98 = vector.shape_cast %97 : vector<1x8x8xf32> to vector<8x8xf32>
    %99 = vector.shape_cast %96 : vector<8x8xf32> to vector<1x8x8xf32>
    tpu.vector_store %arg3[%c0_35, %c0_36, %c24], %99 {strides = array<i32>} : memref<1x8x32xf32, #tpu.memory_space<vmem>>, vector<1x8x8xf32>,
    return
  }
  func.func @transform_0(%arg0: i32) -> (i32, i32, i32) {
    %c0_i32 = arith.constant 0 : i32
    %c0_i32_0 = arith.constant 0 : i32
    %c0_i32_1 = arith.constant 0 : i32
    return %arg0, %c0_i32, %c0_i32_0 : i32, i32, i32
  }
  func.func @transform_1(%arg0: i32) -> (i32, i32, i32, i32) {
    %c0_i32 = arith.constant 0 : i32
    %c0_i32_0 = arith.constant 0 : i32
    %c0_i32_1 = arith.constant 0 : i32
    %c0_i32_2 = arith.constant 0 : i32
    return %arg0, %c0_i32, %c0_i32_0, %c0_i32_1 : i32, i32, i32, i32
  }
  func.func @transform_2(%arg0: i32) -> (i32, i32, i32) {
    %c0_i32 = arith.constant 0 : i32
    %c0_i32_0 = arith.constant 0 : i32
    %c0_i32_1 = arith.constant 0 : i32
    return %arg0, %c0_i32, %c0_i32_0 : i32, i32, i32
  }
}

module attributes {stable_mosaic.version = 11 : i64} {
  func.func @_ln_linear_kernel(%arg0: i32, %arg1: i32, %arg2: memref<16x32xf32, #tpu.memory_space<vmem>>, %arg3: memref<1x32xf32, #tpu.memory_space<vmem>>, %arg4: memref<1x32xf32, #tpu.memory_space<vmem>>, %arg5: memref<32x64xf32, #tpu.memory_space<vmem>>, %arg6: memref<1x64xf32, #tpu.memory_space<vmem>>, %arg7: memref<16x64xf32, #tpu.memory_space<vmem>>) attributes {dimension_semantics = [#tpu.dimension_semantics<parallel>, #tpu.dimension_semantics<parallel>], iteration_bounds = array<i64: 1, 1>, scalar_prefetch = 0 : i64, scratch_operands = 0 : i64, tpu.core_type = #tpu.core_type<tc>, window_params = [{transform_indices = @transform_0, window_bounds = array<i64: 16, 32>}, {pipeline_mode = #tpu.pipeline_mode<synchronous>, transform_indices = @transform_1, window_bounds = array<i64: 1, 32>}, {pipeline_mode = #tpu.pipeline_mode<synchronous>, transform_indices = @transform_2, window_bounds = array<i64: 1, 32>}, {transform_indices = @transform_3, window_bounds = array<i64: 32, 64>}, {transform_indices = @transform_4, window_bounds = array<i64: 1, 64>}, {transform_indices = @transform_5, window_bounds = array<i64: 16, 64>}]} {
    %c0 = arith.constant 0 : index
    %c0_0 = arith.constant 0 : index
    %0 = vector.load %arg2[%c0, %c0_0] : memref<16x32xf32, #tpu.memory_space<vmem>>, vector<16x32xf32>
    %cst = arith.constant dense<0.000000e+00> : vector<16xf32>
    %1 = vector.multi_reduction <add>, %0, %cst [1] : vector<16x32xf32> to vector<16xf32>
    %2 = vector.shape_cast %1 : vector<16xf32> to vector<16x1xf32>
    %cst_1 = arith.constant 3.200000e+01 : f32
    %3 = vector.broadcast %cst_1 : f32 to vector<16x1xf32>
    %4 = arith.divf %2, %3 : vector<16x1xf32>
    %5 = vector.broadcast %4 : vector<16x1xf32> to vector<16x32xf32>
    %6 = arith.subf %0, %5 : vector<16x32xf32>
    %7 = arith.mulf %6, %6 : vector<16x32xf32>
    %cst_2 = arith.constant dense<0.000000e+00> : vector<16xf32>
    %8 = vector.multi_reduction <add>, %7, %cst_2 [1] : vector<16x32xf32> to vector<16xf32>
    %9 = vector.shape_cast %8 : vector<16xf32> to vector<16x1xf32>
    %cst_3 = arith.constant 0.0322580636 : f32
    %10 = vector.broadcast %cst_3 : f32 to vector<16x1xf32>
    %11 = arith.mulf %9, %10 : vector<16x1xf32>
    %12 = math.sqrt %11 : vector<16x1xf32>
    %cst_4 = arith.constant 9.99999997E-7 : f32
    %13 = vector.broadcast %cst_4 : f32 to vector<16x1xf32>
    %14 = arith.addf %12, %13 : vector<16x1xf32>
    %15 = tpu.reciprocal %14 {approx = true} : vector<16x1xf32> -> vector<16x1xf32>
    %c0_5 = arith.constant 0 : index
    %c0_6 = arith.constant 0 : index
    %16 = vector.load %arg3[%c0_5, %c0_6] : memref<1x32xf32, #tpu.memory_space<vmem>>, vector<1x32xf32>
    %17 = vector.broadcast %4 : vector<16x1xf32> to vector<16x32xf32>
    %18 = arith.subf %0, %17 : vector<16x32xf32>
    %19 = vector.broadcast %16 : vector<1x32xf32> to vector<16x32xf32>
    %20 = arith.mulf %19, %18 : vector<16x32xf32>
    %21 = vector.broadcast %15 : vector<16x1xf32> to vector<16x32xf32>
    %22 = arith.mulf %20, %21 : vector<16x32xf32>
    %c0_7 = arith.constant 0 : index
    %c0_8 = arith.constant 0 : index
    %23 = vector.load %arg4[%c0_7, %c0_8] : memref<1x32xf32, #tpu.memory_space<vmem>>, vector<1x32xf32>
    %24 = vector.broadcast %23 : vector<1x32xf32> to vector<16x32xf32>
    %25 = arith.addf %22, %24 : vector<16x32xf32>
    %c0_9 = arith.constant 0 : index
    %c0_10 = arith.constant 0 : index
    %26 = vector.load %arg5[%c0_9, %c0_10] : memref<32x64xf32, #tpu.memory_space<vmem>>, vector<32x64xf32>
    %cst_11 = arith.constant dense<0.000000e+00> : vector<16x64xf32>
    %27 = tpu.matmul %25, %26, %cst_11 {dimension_numbers = #tpu.dot_dimension_numbers<[1], [0], [0], [1], [0, 0, 1, 1], [], []>} : vector<16x32xf32>, vector<32x64xf32>, vector<16x64xf32> -> vector<16x64xf32>
    %c0_12 = arith.constant 0 : index
    %c0_13 = arith.constant 0 : index
    %28 = vector.load %arg6[%c0_12, %c0_13] : memref<1x64xf32, #tpu.memory_space<vmem>>, vector<1x64xf32>
    %29 = vector.broadcast %28 : vector<1x64xf32> to vector<16x64xf32>
    %30 = arith.addf %27, %29 : vector<16x64xf32>
    %cst_14 = arith.constant 0.000000e+00 : f32
    %31 = vector.broadcast %cst_14 : f32 to vector<16x64xf32>
    %32 = arith.maximumf %30, %31 : vector<16x64xf32>
    %c0_15 = arith.constant 0 : index
    %c0_16 = arith.constant 0 : index
    %33 = vector.load %arg7[%c0_15, %c0_16] : memref<16x64xf32, #tpu.memory_space<vmem>>, vector<16x64xf32>
    tpu.vector_store %arg7[%c0_15, %c0_16], %32 {strides = array<i32>} : memref<16x64xf32, #tpu.memory_space<vmem>>, vector<16x64xf32>,
    return
  }
  func.func @transform_0(%arg0: i32, %arg1: i32) -> (i32, i32) {
    %c0_i32 = arith.constant 0 : i32
    %c0_i32_0 = arith.constant 0 : i32
    return %arg0, %c0_i32 : i32, i32
  }
  func.func @transform_1(%arg0: i32, %arg1: i32) -> (i32, i32) {
    %c0_i32 = arith.constant 0 : i32
    %c0_i32_0 = arith.constant 0 : i32
    %c0_i32_1 = arith.constant 0 : i32
    return %c0_i32, %c0_i32_0 : i32, i32
  }
  func.func @transform_2(%arg0: i32, %arg1: i32) -> (i32, i32) {
    %c0_i32 = arith.constant 0 : i32
    %c0_i32_0 = arith.constant 0 : i32
    %c0_i32_1 = arith.constant 0 : i32
    return %c0_i32, %c0_i32_0 : i32, i32
  }
  func.func @transform_3(%arg0: i32, %arg1: i32) -> (i32, i32) {
    %c0_i32 = arith.constant 0 : i32
    %c0_i32_0 = arith.constant 0 : i32
    return %c0_i32, %arg1 : i32, i32
  }
  func.func @transform_4(%arg0: i32, %arg1: i32) -> (i32, i32) {
    %c0_i32 = arith.constant 0 : i32
    %c0_i32_0 = arith.constant 0 : i32
    return %c0_i32, %arg1 : i32, i32
  }
  func.func @transform_5(%arg0: i32, %arg1: i32) -> (i32, i32) {
    %c0_i32 = arith.constant 0 : i32
    return %arg0, %arg1 : i32, i32
  }
}

module attributes {stable_mosaic.version = 11 : i64} {
  func.func @_linear_residual_kernel(%arg0: i32, %arg1: i32, %arg2: i32, %arg3: memref<16x64xf32, #tpu.memory_space<vmem>>, %arg4: memref<64x32xf32, #tpu.memory_space<vmem>>, %arg5: memref<1x32xf32, #tpu.memory_space<vmem>>, %arg6: memref<16x32xf32, #tpu.memory_space<vmem>>, %arg7: memref<16x32xf32, #tpu.memory_space<vmem>>, %arg8: memref<16x32xf32, #tpu.memory_space<vmem>>) attributes {dimension_semantics = [#tpu.dimension_semantics<parallel>, #tpu.dimension_semantics<parallel>, #tpu.dimension_semantics<arbitrary>], iteration_bounds = array<i64: 1, 1, 1>, scalar_prefetch = 0 : i64, scratch_operands = 1 : i64, tpu.core_type = #tpu.core_type<tc>, window_params = [{transform_indices = @transform_0, window_bounds = array<i64: 16, 64>}, {transform_indices = @transform_1, window_bounds = array<i64: 64, 32>}, {transform_indices = @transform_2, window_bounds = array<i64: 1, 32>}, {transform_indices = @transform_3, window_bounds = array<i64: 16, 32>}, {transform_indices = @transform_4, window_bounds = array<i64: 16, 32>}]} {
    %c0_i32 = arith.constant 0 : i32
    %0 = arith.cmpi eq, %arg2, %c0_i32 : i32
    %1 = arith.extui %0 : i1 to i32
    %c0_i32_0 = arith.constant 0 : i32
    %2 = arith.cmpi ne, %1, %c0_i32_0 : i32
    scf.if %2 {
      %cst_10 = arith.constant 0.000000e+00 : f32
      %12 = vector.broadcast %cst_10 : f32 to vector<16x32xf32>
      %c0_11 = arith.constant 0 : index
      %c0_12 = arith.constant 0 : index
      %13 = vector.load %arg8[%c0_11, %c0_12] : memref<16x32xf32, #tpu.memory_space<vmem>>, vector<16x32xf32>
      tpu.vector_store %arg8[%c0_11, %c0_12], %12 {strides = array<i32>} : memref<16x32xf32, #tpu.memory_space<vmem>>, vector<16x32xf32>,
    } else {
    }
    %c0 = arith.constant 0 : index
    %c0_1 = arith.constant 0 : index
    %3 = vector.load %arg8[%c0, %c0_1] : memref<16x32xf32, #tpu.memory_space<vmem>>, vector<16x32xf32>
    %c0_2 = arith.constant 0 : index
    %c0_3 = arith.constant 0 : index
    %4 = vector.load %arg3[%c0_2, %c0_3] : memref<16x64xf32, #tpu.memory_space<vmem>>, vector<16x64xf32>
    %c0_4 = arith.constant 0 : index
    %c0_5 = arith.constant 0 : index
    %5 = vector.load %arg4[%c0_4, %c0_5] : memref<64x32xf32, #tpu.memory_space<vmem>>, vector<64x32xf32>
    %cst = arith.constant dense<0.000000e+00> : vector<16x32xf32>
    %6 = tpu.matmul %4, %5, %cst {dimension_numbers = #tpu.dot_dimension_numbers<[1], [0], [0], [1], [0, 0, 1, 1], [], []>} : vector<16x64xf32>, vector<64x32xf32>, vector<16x32xf32> -> vector<16x32xf32>
    %7 = arith.addf %3, %6 : vector<16x32xf32>
    %c0_6 = arith.constant 0 : index
    %c0_7 = arith.constant 0 : index
    %8 = vector.load %arg8[%c0_6, %c0_7] : memref<16x32xf32, #tpu.memory_space<vmem>>, vector<16x32xf32>
    tpu.vector_store %arg8[%c0_6, %c0_7], %7 {strides = array<i32>} : memref<16x32xf32, #tpu.memory_space<vmem>>, vector<16x32xf32>,
    %c0_i32_8 = arith.constant 0 : i32
    %9 = arith.cmpi eq, %arg2, %c0_i32_8 : i32
    %10 = arith.extui %9 : i1 to i32
    %c0_i32_9 = arith.constant 0 : i32
    %11 = arith.cmpi ne, %10, %c0_i32_9 : i32
    scf.if %11 {
      %c0_10 = arith.constant 0 : index
      %c0_11 = arith.constant 0 : index
      %12 = vector.load %arg8[%c0_10, %c0_11] : memref<16x32xf32, #tpu.memory_space<vmem>>, vector<16x32xf32>
      %c0_12 = arith.constant 0 : index
      %c0_13 = arith.constant 0 : index
      %13 = vector.load %arg5[%c0_12, %c0_13] : memref<1x32xf32, #tpu.memory_space<vmem>>, vector<1x32xf32>
      %14 = vector.broadcast %13 : vector<1x32xf32> to vector<16x32xf32>
      %15 = arith.addf %12, %14 : vector<16x32xf32>
      %c0_14 = arith.constant 0 : index
      %c0_15 = arith.constant 0 : index
      %16 = vector.load %arg6[%c0_14, %c0_15] : memref<16x32xf32, #tpu.memory_space<vmem>>, vector<16x32xf32>
      %17 = arith.addf %15, %16 : vector<16x32xf32>
      %c0_16 = arith.constant 0 : index
      %c0_17 = arith.constant 0 : index
      %18 = vector.load %arg7[%c0_16, %c0_17] : memref<16x32xf32, #tpu.memory_space<vmem>>, vector<16x32xf32>
      tpu.vector_store %arg7[%c0_16, %c0_17], %17 {strides = array<i32>} : memref<16x32xf32, #tpu.memory_space<vmem>>, vector<16x32xf32>,
    } else {
    }
    return
  }
  func.func @transform_0(%arg0: i32, %arg1: i32, %arg2: i32) -> (i32, i32) {
    %c0_i32 = arith.constant 0 : i32
    return %arg0, %arg2 : i32, i32
  }
  func.func @transform_1(%arg0: i32, %arg1: i32, %arg2: i32) -> (i32, i32) {
    %c0_i32 = arith.constant 0 : i32
    return %arg2, %arg1 : i32, i32
  }
  func.func @transform_2(%arg0: i32, %arg1: i32, %arg2: i32) -> (i32, i32) {
    %c0_i32 = arith.constant 0 : i32
    %c0_i32_0 = arith.constant 0 : i32
    return %c0_i32, %arg1 : i32, i32
  }
  func.func @transform_3(%arg0: i32, %arg1: i32, %arg2: i32) -> (i32, i32) {
    %c0_i32 = arith.constant 0 : i32
    return %arg0, %arg1 : i32, i32
  }
  func.func @transform_4(%arg0: i32, %arg1: i32, %arg2: i32) -> (i32, i32) {
    %c0_i32 = arith.constant 0 : i32
    return %arg0, %arg1 : i32, i32
  }
}

module attributes {stable_mosaic.version = 11 : i64} {
  func.func @_layernorm_kernel(%arg0: i32, %arg1: memref<16x32xf32, #tpu.memory_space<vmem>>, %arg2: memref<1x32xf32, #tpu.memory_space<vmem>>, %arg3: memref<1x32xf32, #tpu.memory_space<vmem>>, %arg4: memref<16x32xf32, #tpu.memory_space<vmem>>) attributes {dimension_semantics = [#tpu.dimension_semantics<parallel>], iteration_bounds = array<i64: 1>, scalar_prefetch = 0 : i64, scratch_operands = 0 : i64, tpu.core_type = #tpu.core_type<tc>, window_params = [{transform_indices = @transform_0, window_bounds = array<i64: 16, 32>}, {pipeline_mode = #tpu.pipeline_mode<synchronous>, transform_indices = @transform_1, window_bounds = array<i64: 1, 32>}, {pipeline_mode = #tpu.pipeline_mode<synchronous>, transform_indices = @transform_2, window_bounds = array<i64: 1, 32>}, {transform_indices = @transform_3, window_bounds = array<i64: 16, 32>}]} {
    %c0 = arith.constant 0 : index
    %c0_0 = arith.constant 0 : index
    %0 = vector.load %arg1[%c0, %c0_0] : memref<16x32xf32, #tpu.memory_space<vmem>>, vector<16x32xf32>
    %cst = arith.constant dense<0.000000e+00> : vector<16xf32>
    %1 = vector.multi_reduction <add>, %0, %cst [1] : vector<16x32xf32> to vector<16xf32>
    %2 = vector.shape_cast %1 : vector<16xf32> to vector<16x1xf32>
    %cst_1 = arith.constant 3.200000e+01 : f32
    %3 = vector.broadcast %cst_1 : f32 to vector<16x1xf32>
    %4 = arith.divf %2, %3 : vector<16x1xf32>
    %5 = vector.broadcast %4 : vector<16x1xf32> to vector<16x32xf32>
    %6 = arith.subf %0, %5 : vector<16x32xf32>
    %7 = arith.mulf %6, %6 : vector<16x32xf32>
    %cst_2 = arith.constant dense<0.000000e+00> : vector<16xf32>
    %8 = vector.multi_reduction <add>, %7, %cst_2 [1] : vector<16x32xf32> to vector<16xf32>
    %9 = vector.shape_cast %8 : vector<16xf32> to vector<16x1xf32>
    %cst_3 = arith.constant 0.0322580636 : f32
    %10 = vector.broadcast %cst_3 : f32 to vector<16x1xf32>
    %11 = arith.mulf %9, %10 : vector<16x1xf32>
    %12 = math.sqrt %11 : vector<16x1xf32>
    %cst_4 = arith.constant 9.99999997E-7 : f32
    %13 = vector.broadcast %cst_4 : f32 to vector<16x1xf32>
    %14 = arith.addf %12, %13 : vector<16x1xf32>
    %15 = tpu.reciprocal %14 {approx = true} : vector<16x1xf32> -> vector<16x1xf32>
    %c0_5 = arith.constant 0 : index
    %c0_6 = arith.constant 0 : index
    %16 = vector.load %arg2[%c0_5, %c0_6] : memref<1x32xf32, #tpu.memory_space<vmem>>, vector<1x32xf32>
    %17 = vector.broadcast %4 : vector<16x1xf32> to vector<16x32xf32>
    %18 = arith.subf %0, %17 : vector<16x32xf32>
    %19 = vector.broadcast %16 : vector<1x32xf32> to vector<16x32xf32>
    %20 = arith.mulf %19, %18 : vector<16x32xf32>
    %21 = vector.broadcast %15 : vector<16x1xf32> to vector<16x32xf32>
    %22 = arith.mulf %20, %21 : vector<16x32xf32>
    %c0_7 = arith.constant 0 : index
    %c0_8 = arith.constant 0 : index
    %23 = vector.load %arg3[%c0_7, %c0_8] : memref<1x32xf32, #tpu.memory_space<vmem>>, vector<1x32xf32>
    %24 = vector.broadcast %23 : vector<1x32xf32> to vector<16x32xf32>
    %25 = arith.addf %22, %24 : vector<16x32xf32>
    %c0_9 = arith.constant 0 : index
    %c0_10 = arith.constant 0 : index
    %26 = vector.load %arg4[%c0_9, %c0_10] : memref<16x32xf32, #tpu.memory_space<vmem>>, vector<16x32xf32>
    tpu.vector_store %arg4[%c0_9, %c0_10], %25 {strides = array<i32>} : memref<16x32xf32, #tpu.memory_space<vmem>>, vector<16x32xf32>,
    return
  }
  func.func @transform_0(%arg0: i32) -> (i32, i32) {
    %c0_i32 = arith.constant 0 : i32
    %c0_i32_0 = arith.constant 0 : i32
    return %arg0, %c0_i32 : i32, i32
  }
  func.func @transform_1(%arg0: i32) -> (i32, i32) {
    %c0_i32 = arith.constant 0 : i32
    %c0_i32_0 = arith.constant 0 : i32
    %c0_i32_1 = arith.constant 0 : i32
    return %c0_i32, %c0_i32_0 : i32, i32
  }
  func.func @transform_2(%arg0: i32) -> (i32, i32) {
    %c0_i32 = arith.constant 0 : i32
    %c0_i32_0 = arith.constant 0 : i32
    %c0_i32_1 = arith.constant 0 : i32
    return %c0_i32, %c0_i32_0 : i32, i32
  }
  func.func @transform_3(%arg0: i32) -> (i32, i32) {
    %c0_i32 = arith.constant 0 : i32
    %c0_i32_0 = arith.constant 0 : i32
    return %arg0, %c0_i32 : i32, i32
  }
}

</mosaic_0001>

<llo_original>
// kernel: encoder_forward.11
$region0: #{encoder_forward.11}
  #allocation0 [shape = 'u32[]', space=smem, size = 0x4, offset = 0x4, fixed_abs, tag = 'smem constant byte address 0x4 - core index']
  #allocation1 [shape = 'u32[144,128]{1,0:T(1,128)}', space=vmem, size = 0x12000, scoped, tag = 'internal scratch']
  %s0 = inlined_call_operand.vmem [shape: f32[16,32], index: 0, kind: input, shape index: {}]
  %s1 = inlined_call_operand.vmem [shape: f32[1,32], index: 1, kind: input, shape index: {}]
  %s2 = inlined_call_operand.vmem [shape: f32[1,32], index: 2, kind: input, shape index: {}]
  %s3 = inlined_call_operand.vmem [shape: f32[32,96], index: 3, kind: input, shape index: {}]
  %s4 = inlined_call_operand.vmem [shape: f32[1,96], index: 4, kind: input, shape index: {}]
  %s5 = inlined_call_operand.vmem [shape: f32[16,96], index: 5, kind: output, shape index: {}]
  %s6 = sld [smem:[#allocation0]]
  $region30: #{encoder_forward.11} parent=0
    _
  %s8 = ssub.s32 1, %s6
  %s9 = scalar_select 0, %s8, %s6
  // Predicated region
  $region2: #{encoder_forward.11} parent=0 // pred_check
    _
  $region3: #{encoder_forward.11} parent=0 // pred_check_branch
    %11 = sbr.rel (0) target = $region5
  $region4: #{encoder_forward.11} parent=0 // pred_region
    _
  $region5: #{encoder_forward.11} parent=0 // pred_fallthru
    _
  // Predicated region
  $region6: #{encoder_forward.11} parent=0 // pred_check
    _
  $region7: #{encoder_forward.11} parent=0 // pred_check_branch
    %13 = sbr.rel (0) target = $region9
  $region8: #{encoder_forward.11} parent=0 // pred_region
    _
  $region9: #{encoder_forward.11} parent=0 // pred_fallthru
    _
  // Predicated region
  $region10: #{encoder_forward.11} parent=0 // pred_check
    _
  $region11: #{encoder_forward.11} parent=0 // pred_check_branch
    %15 = sbr.rel (0) target = $region13
  $region12: #{encoder_forward.11} parent=0 // pred_region
    _
  $region13: #{encoder_forward.11} parent=0 // pred_fallthru
    _
  // Predicated region
  $region14: #{encoder_forward.11} parent=0 // pred_check
    _
  $region15: #{encoder_forward.11} parent=0 // pred_check_branch
    %17 = sbr.rel (0) target = $region17
  $region16: #{encoder_forward.11} parent=0 // pred_region
    _
  $region17: #{encoder_forward.11} parent=0 // pred_fallthru
    _
  // Predicated region
  $region18: #{encoder_forward.11} parent=0 // pred_check
    _
  $region19: #{encoder_forward.11} parent=0 // pred_check_branch
    %19 = sbr.rel (0) target = $region21
  $region20: #{encoder_forward.11} parent=0 // pred_region
    _
  $region21: #{encoder_forward.11} parent=0 // pred_fallthru
    _
  %v20 = vld [vmem:[%s0] sm:$0xff]
  %v21 = vld [vmem:[%s0 + $0x8] sm:$0xff]
  %vm22 = vcmask 261120
  %v23 = vsel %vm22, %v20, 0.0
  %24 = vadd.xlane.f32.xlu0 %v23
  %v25 = vpop.xlane.xlu0 %24
  %v26 = vsel %vm22, %v21, 0.0
  %27 = vadd.xlane.f32.xlu0 %v26
  %v28 = vpop.xlane.xlu0 %27
  %v29 = vrcp.pop 32.0
  %v30 = vmul.f32 %v25, %v29
  %v31 = vmul.f32 %v28, %v29
  %v32 = vsub.f32 %v20, %v30
  %v33 = vsub.f32 %v21, %v31
  %v34 = vmul.f32 %v32, %v32
  %v35 = vmul.f32 %v33, %v33
  %v36 = vsel %vm22, %v34, 0.0
  %37 = vadd.xlane.f32.xlu0 %v36
  %v38 = vpop.xlane.xlu0 %37
  %v39 = vsel %vm22, %v35, 0.0
  %40 = vadd.xlane.f32.xlu0 %v39
  %v41 = vpop.xlane.xlu0 %40
  %v42 = vmul.f32 %v38, 0.032258064
  %v43 = vmul.f32 %v41, 0.032258064
  %v44 = vrsqrt.pop %v42
  %v45 = vmul.f32 %v42, %v44
  %vm46 = vcmp.eq.f32.partialorder %v42, inf
  %v47 = vsel %vm46, %v42, %v45
  %vm48 = vcmp.eq.f32.partialorder %v42, 0.0
  %v49 = vand.u32 %v42, 2147483648
  %v50 = vsel %vm48, %v49, %v47
  %v51 = vrsqrt.pop %v43
  %v52 = vmul.f32 %v43, %v51
  %vm53 = vcmp.eq.f32.partialorder %v43, inf
  %v54 = vsel %vm53, %v43, %v52
  %vm55 = vcmp.eq.f32.partialorder %v43, 0.0
  %v56 = vand.u32 %v43, 2147483648
  %v57 = vsel %vm55, %v56, %v54
  %v58 = vadd.f32 %v50, 1e-06
  %v59 = vadd.f32 %v57, 1e-06
  %v60 = vrcp.pop %v58
  %v61 = vrcp.pop %v59
  %v62 = vld [vmem:[%s1] sm:$0x1]
  %v64 = vlaneseq
  %v65 = vshrl.u32 %v64, 7
  %v66 = vsub.s32 0, %v65
  %v67 = vrot.slane %v62, %v66
  %v69 = vmul.f32 %v67, %v32
  %v70 = vmul.f32 %v67, %v33
  %v71 = vmul.f32 %v69, %v60
  %v72 = vmul.f32 %v70, %v61
  %v73 = vld [vmem:[%s2] sm:$0x1]
  %v75 = vlaneseq
  %v76 = vshrl.u32 %v75, 7
  %v77 = vsub.s32 0, %v76
  %v78 = vrot.slane %v73, %v77
  %v80 = vadd.f32 %v71, %v78
  %v81 = vadd.f32 %v72, %v78
  %v82 = vld [vmem:[%s3] sm:$0xff]
  %v83 = vld [vmem:[%s3 + $0x8] sm:$0xff]
  %v84 = vld [vmem:[%s3 + $0x10] sm:$0xff]
  %v85 = vld [vmem:[%s3 + $0x18] sm:$0xff]
  %v86 = vld [vmem:[%s4] sm:$0x1]
  %v88 = vlaneseq
  %v89 = vshrl.u32 %v88, 7
  %v90 = vsub.s32 0, %v89
  %v91 = vrot.slane %v86, %v90
  %v94 = vsel %vm22, %v80, 0
  %v97 = vsel %vm22, %v81, 0
  %99 = vmatprep.subr.mxu0 0.0
  %100 = vmatpush1.msra.mxu0 0.0
  %101 = vmatprep.subr.mxu0 0.0
  %102 = vmatpush1.msra.mxu0 0.0
  %103 = vmatprep.subr.mxu0 0.0
  %104 = vmatpush1.msra.mxu0 0.0
  %105 = vmatprep.subr.mxu0 0.0
  %106 = vmatpush1.msra.mxu0 0.0
  %107 = vmatprep.subr.mxu0 0.0
  %108 = vmatpush1.msra.mxu0 0.0
  %109 = vmatprep.subr.mxu0 0.0
  %110 = vmatpush1.msra.mxu0 0.0
  %111 = vmatprep.subr.mxu0 0.0
  %112 = vmatpush1.msra.mxu0 0.0
  %113 = vmatprep.subr.mxu0 0.0
  %114 = vmatpush1.msra.mxu0 0.0
  %115 = vmatprep.subr.mxu0 0.0
  %116 = vmatpush1.msra.mxu0 0.0
  %117 = vmatprep.subr.mxu0 0.0
  %118 = vmatpush1.msra.mxu0 0.0
  %119 = vmatprep.subr.mxu0 0.0
  %120 = vmatpush1.msra.mxu0 0.0
  %121 = vmatprep.subr.mxu0 0.0
  %122 = vmatpush1.msra.mxu0 0.0
  %123 = vmatprep.subr.mxu0 0.0
  %124 = vmatpush1.msra.mxu0 %v85
  %125 = vmatprep.subr.mxu0 0.0
  %126 = vmatpush1.msra.mxu0 %v84
  %127 = vmatprep.subr.mxu0 0.0
  %128 = vmatpush1.msra.mxu0 %v83
  %129 = vmatprep.subr.mxu0 0.0
  %130 = vmatpush1.msra.mxu0 %v82
  %131 = vmatprep.subr.mxu0 0.0
  %132 = vmatpush2.msra.mxu0 0.0
  %133 = vmatprep.subr.mxu0 0.0
  %134 = vmatpush2.msra.mxu0 0.0
  %135 = vmatprep.subr.mxu0 0.0
  %136 = vmatpush2.msra.mxu0 0.0
  %137 = vmatprep.subr.mxu0 0.0
  %138 = vmatpush2.msra.mxu0 0.0
  %139 = vmatprep.subr.mxu0 0.0
  %140 = vmatpush2.msra.mxu0 0.0
  %141 = vmatprep.subr.mxu0 0.0
  %142 = vmatpush2.msra.mxu0 0.0
  %143 = vmatprep.subr.mxu0 0.0
  %144 = vmatpush2.msra.mxu0 0.0
  %145 = vmatprep.subr.mxu0 0.0
  %146 = vmatpush2.msra.mxu0 0.0
  %147 = vmatprep.subr.mxu0 0.0
  %148 = vmatpush2.msra.mxu0 0.0
  %149 = vmatprep.subr.mxu0 0.0
  %150 = vmatpush2.msra.mxu0 0.0
  %151 = vmatprep.subr.mxu0 0.0
  %152 = vmatpush2.msra.mxu0 0.0
  %153 = vmatprep.subr.mxu0 0.0
  %154 = vmatpush2.msra.mxu0 0.0
  %155 = vmatprep.subr.mxu0 0.0
  %156 = vmatpush2.msra.mxu0 0.0
  %157 = vmatprep.subr.mxu0 0.0
  %158 = vmatpush2.msra.mxu0 0.0
  %159 = vmatprep.subr.mxu0 0.0
  %160 = vmatpush2.msra.mxu0 0.0
  %161 = vmatprep.subr.mxu0 0.0
  %162 = vmatpush2.msra.mxu0 0.0
  %163 = vmatprep.mubr.f32.mxu0 0.0
  %164 = vmatmul.mubr.f32.gmra.mxu0 %v94
  %v165 = vpop.f32.mrf.mxu0
  %v166 = vadd.f32 %v91, %v165
  %v167 = vpop.f32.mrf.mxu0
  %168 = vmatprep.mubr.f32.mxu0 0.0
  %169 = vmatmul.mubr.f32.gmra.mxu0 %v97
  %v170 = vpop.f32.mrf.mxu0
  %v171 = vadd.f32 %v91, %v170
  %v172 = vpop.f32.mrf.mxu0
  %173 = vdwg.mxu0
  %vm174 = vcmask 785408
  %175 = vst.msk [vmem:[%s5] sm:$0xff] %vm174, %v166
  %176 = vst.msk [vmem:[%s5 + $0x8] sm:$0xff] %vm174, %v171
  // Predicated region
  $region22: #{encoder_forward.11} parent=0 // pred_check
    _
  $region23: #{encoder_forward.11} parent=0 // pred_check_branch
    %178 = sbr.rel (0) target = $region25
  $region24: #{encoder_forward.11} parent=0 // pred_region
    _
  $region25: #{encoder_forward.11} parent=0 // pred_fallthru
    _
  // Predicated region
  $region26: #{encoder_forward.11} parent=0 // pred_check
    _
  $region27: #{encoder_forward.11} parent=0 // pred_check_branch
    %180 = sbr.rel (0) target = $region29
  $region28: #{encoder_forward.11} parent=0 // pred_region
    _
  $region29: #{encoder_forward.11} parent=0 // pred_fallthru
    _

// kernel: encoder_forward.13
$region0: #{encoder_forward.13}
  #allocation0 [shape = 'u32[]', space=smem, size = 0x4, offset = 0x4, fixed_abs, tag = 'smem constant byte address 0x4 - core index']
  #allocation1 [shape = 'u32[144,128]{1,0:T(1,128)}', space=vmem, size = 0x12000, scoped, tag = 'internal scratch']
  #allocation2 [shape = 'f32[16,32]{1,0:T(8,128)}', space=vmem, size = 0x2000, scoped, tag = 'scratch operand']
  %s0 = inlined_call_operand.vmem [shape: f32[16,32], index: 0, kind: input, shape index: {}]
  %s1 = inlined_call_operand.vmem [shape: f32[32,32], index: 1, kind: input, shape index: {}]
  %s2 = inlined_call_operand.vmem [shape: f32[1,32], index: 2, kind: input, shape index: {}]
  %s3 = inlined_call_operand.vmem [shape: f32[16,32], index: 3, kind: input, shape index: {}]
  %s4 = inlined_call_operand.vmem [shape: f32[16,32], index: 4, kind: output, shape index: {}]
  %s5 = sld [smem:[#allocation0]]
  $region34: #{encoder_forward.13} parent=0
    _
  %s7 = ssub.s32 1, %s5
  %s8 = scalar_select 0, %s7, %s5
  // Predicated region
  $region2: #{encoder_forward.13} parent=0 // pred_check
    _
  $region3: #{encoder_forward.13} parent=0 // pred_check_branch
    %10 = sbr.rel (0) target = $region5
  $region4: #{encoder_forward.13} parent=0 // pred_region
    _
  $region5: #{encoder_forward.13} parent=0 // pred_fallthru
    _
  // Predicated region
  $region6: #{encoder_forward.13} parent=0 // pred_check
    _
  $region7: #{encoder_forward.13} parent=0 // pred_check_branch
    %12 = sbr.rel (0) target = $region9
  $region8: #{encoder_forward.13} parent=0 // pred_region
    _
  $region9: #{encoder_forward.13} parent=0 // pred_fallthru
    _
  // Predicated region
  $region10: #{encoder_forward.13} parent=0 // pred_check
    _
  $region11: #{encoder_forward.13} parent=0 // pred_check_branch
    %14 = sbr.rel (0) target = $region13
  $region12: #{encoder_forward.13} parent=0 // pred_region
    _
  $region13: #{encoder_forward.13} parent=0 // pred_fallthru
    _
  // Predicated region
  $region14: #{encoder_forward.13} parent=0 // pred_check
    _
  $region15: #{encoder_forward.13} parent=0 // pred_check_branch
    %16 = sbr.rel (0) target = $region17
  $region16: #{encoder_forward.13} parent=0 // pred_region
    _
  $region17: #{encoder_forward.13} parent=0 // pred_fallthru
    _
  %p17 = scmp.eq.s32.totalorder 0, 0
  // Predicated region
  $region18: #{encoder_forward.13} parent=0 // pred_check
    %p18 = pneg %p17
  $region19: #{encoder_forward.13} parent=0 // pred_check_branch
    %20 = sbr.rel (%p18) target = $region21
  $region20: #{encoder_forward.13} parent=0 // pred_region
    %vm21 = vcmask 261120
    %22 = vst.msk [vmem:[#allocation2] sm:$0xff] %vm21, 0.0
    %23 = vst.msk [vmem:[#allocation2 + $0x8] sm:$0xff] %vm21, 0.0
  $region21: #{encoder_forward.13} parent=0 // pred_fallthru
    _
  %v24 = vld [vmem:[#allocation2] sm:$0xff]
  %v25 = vld [vmem:[#allocation2 + $0x8] sm:$0xff]
  %v26 = vld [vmem:[%s0] sm:$0xff]
  %v27 = vld [vmem:[%s0 + $0x8] sm:$0xff]
  %v28 = vld [vmem:[%s1] sm:$0xff]
  %v29 = vld [vmem:[%s1 + $0x8] sm:$0xff]
  %v30 = vld [vmem:[%s1 + $0x10] sm:$0xff]
  %v31 = vld [vmem:[%s1 + $0x18] sm:$0xff]
  %vm32 = vcmask 261120
  %v34 = vsel %vm32, %v26, 0
  %v37 = vsel %vm32, %v27, 0
  %39 = vmatprep.subr.mxu0 0.0
  %40 = vmatpush1.msra.mxu0 0.0
  %41 = vmatprep.subr.mxu0 0.0
  %42 = vmatpush1.msra.mxu0 0.0
  %43 = vmatprep.subr.mxu0 0.0
  %44 = vmatpush1.msra.mxu0 0.0
  %45 = vmatprep.subr.mxu0 0.0
  %46 = vmatpush1.msra.mxu0 0.0
  %47 = vmatprep.subr.mxu0 0.0
  %48 = vmatpush1.msra.mxu0 0.0
  %49 = vmatprep.subr.mxu0 0.0
  %50 = vmatpush1.msra.mxu0 0.0
  %51 = vmatprep.subr.mxu0 0.0
  %52 = vmatpush1.msra.mxu0 0.0
  %53 = vmatprep.subr.mxu0 0.0
  %54 = vmatpush1.msra.mxu0 0.0
  %55 = vmatprep.subr.mxu0 0.0
  %56 = vmatpush1.msra.mxu0 0.0
  %57 = vmatprep.subr.mxu0 0.0
  %58 = vmatpush1.msra.mxu0 0.0
  %59 = vmatprep.subr.mxu0 0.0
  %60 = vmatpush1.msra.mxu0 0.0
  %61 = vmatprep.subr.mxu0 0.0
  %62 = vmatpush1.msra.mxu0 0.0
  %63 = vmatprep.subr.mxu0 0.0
  %64 = vmatpush1.msra.mxu0 %v31
  %65 = vmatprep.subr.mxu0 0.0
  %66 = vmatpush1.msra.mxu0 %v30
  %67 = vmatprep.subr.mxu0 0.0
  %68 = vmatpush1.msra.mxu0 %v29
  %69 = vmatprep.subr.mxu0 0.0
  %70 = vmatpush1.msra.mxu0 %v28
  %71 = vmatprep.subr.mxu0 0.0
  %72 = vmatpush2.msra.mxu0 0.0
  %73 = vmatprep.subr.mxu0 0.0
  %74 = vmatpush2.msra.mxu0 0.0
  %75 = vmatprep.subr.mxu0 0.0
  %76 = vmatpush2.msra.mxu0 0.0
  %77 = vmatprep.subr.mxu0 0.0
  %78 = vmatpush2.msra.mxu0 0.0
  %79 = vmatprep.subr.mxu0 0.0
  %80 = vmatpush2.msra.mxu0 0.0
  %81 = vmatprep.subr.mxu0 0.0
  %82 = vmatpush2.msra.mxu0 0.0
  %83 = vmatprep.subr.mxu0 0.0
  %84 = vmatpush2.msra.mxu0 0.0
  %85 = vmatprep.subr.mxu0 0.0
  %86 = vmatpush2.msra.mxu0 0.0
  %87 = vmatprep.subr.mxu0 0.0
  %88 = vmatpush2.msra.mxu0 0.0
  %89 = vmatprep.subr.mxu0 0.0
  %90 = vmatpush2.msra.mxu0 0.0
  %91 = vmatprep.subr.mxu0 0.0
  %92 = vmatpush2.msra.mxu0 0.0
  %93 = vmatprep.subr.mxu0 0.0
  %94 = vmatpush2.msra.mxu0 0.0
  %95 = vmatprep.subr.mxu0 0.0
  %96 = vmatpush2.msra.mxu0 0.0
  %97 = vmatprep.subr.mxu0 0.0
  %98 = vmatpush2.msra.mxu0 0.0
  %99 = vmatprep.subr.mxu0 0.0
  %100 = vmatpush2.msra.mxu0 0.0
  %101 = vmatprep.subr.mxu0 0.0
  %102 = vmatpush2.msra.mxu0 0.0
  %103 = vmatprep.mubr.f32.mxu0 0.0
  %104 = vmatmul.mubr.f32.gmra.mxu0 %v34
  %v105 = vpop.f32.mrf.mxu0
  %v106 = vadd.f32 0.0, %v105
  %v107 = vpop.f32.mrf.mxu0
  %108 = vmatprep.mubr.f32.mxu0 0.0
  %109 = vmatmul.mubr.f32.gmra.mxu0 %v37
  %v110 = vpop.f32.mrf.mxu0
  %v111 = vadd.f32 0.0, %v110
  %v112 = vpop.f32.mrf.mxu0
  %113 = vdwg.mxu0
  %v114 = vadd.f32 %v24, %v106
  %v115 = vadd.f32 %v25, %v111
  %116 = vst.msk [vmem:[#allocation2] sm:$0xff] %vm32, %v114
  %117 = vst.msk [vmem:[#allocation2 + $0x8] sm:$0xff] %vm32, %v115
  // Predicated region
  $region22: #{encoder_forward.13} parent=0 // pred_check
    %p118 = pneg %p17
  $region23: #{encoder_forward.13} parent=0 // pred_check_branch
    %120 = sbr.rel (%p118) target = $region25
  $region24: #{encoder_forward.13} parent=0 // pred_region
    %v121 = vld [vmem:[#allocation2] sm:$0xff]
    %v122 = vld [vmem:[#allocation2 + $0x8] sm:$0xff]
    %v123 = vld [vmem:[%s2] sm:$0x1]
    %v125 = vlaneseq
    %v126 = vshrl.u32 %v125, 7
    %v127 = vsub.s32 0, %v126
    %v128 = vrot.slane %v123, %v127
    %v130 = vadd.f32 %v121, %v128
    %v131 = vadd.f32 %v122, %v128
    %v132 = vld [vmem:[%s3] sm:$0xff]
    %v133 = vld [vmem:[%s3 + $0x8] sm:$0xff]
    %v134 = vadd.f32 %v130, %v132
    %v135 = vadd.f32 %v131, %v133
    %136 = vst.msk [vmem:[%s4] sm:$0xff] %vm32, %v134
    %137 = vst.msk [vmem:[%s4 + $0x8] sm:$0xff] %vm32, %v135
  $region25: #{encoder_forward.13} parent=0 // pred_fallthru
    _
  // Predicated region
  $region26: #{encoder_forward.13} parent=0 // pred_check
    _
  $region27: #{encoder_forward.13} parent=0 // pred_check_branch
    %139 = sbr.rel (0) target = $region29
  $region28: #{encoder_forward.13} parent=0 // pred_region
    _
  $region29: #{encoder_forward.13} parent=0 // pred_fallthru
    _
  // Predicated region
  $region30: #{encoder_forward.13} parent=0 // pred_check
    _
  $region31: #{encoder_forward.13} parent=0 // pred_check_branch
    %141 = sbr.rel (0) target = $region33
  $region32: #{encoder_forward.13} parent=0 // pred_region
    _
  $region33: #{encoder_forward.13} parent=0 // pred_fallthru
    _

// kernel: encoder_forward.12
$region0: #{encoder_forward.12}
  #allocation0 [shape = 'u32[]', space=smem, size = 0x4, offset = 0x4, fixed_abs, tag = 'smem constant byte address 0x4 - core index']
  #allocation1 [shape = 'u32[144,128]{1,0:T(1,128)}', space=vmem, size = 0x12000, scoped, tag = 'internal scratch']
  %s0 = inlined_call_operand.vmem [shape: f32[2,8,96], index: 0, kind: input, shape index: {}]
  %s1 = inlined_call_operand.vmem [shape: s32[2,1,1,8], index: 1, kind: input, shape index: {}]
  %s2 = inlined_call_operand.vmem [shape: f32[2,8,32], index: 2, kind: output, shape index: {}]
  %s3 = sld [smem:[#allocation0]]
  $region41: #{encoder_forward.12} parent=0
    _
  %s5 = ssub.s32 1, %s3
  %s6 = scalar_select 0, %s5, %s3
  loop: start=0, step=1, limit=4
  $region2: #{encoder_forward.12} parent=0 // loop_pre_header
    _
  $region3: #{encoder_forward.12} parent=0 // loop_header
    %s8 = sphi 0, %s12
    %p9 = scmp.ge.s32.totalorder %s8, 4
    %s18 = sphi 0, %s20
    %s21 = sphi 0, %s18
    %s22 = sphi 0, %s21
    %s38 = sphi 0, %s22
    %s44 = sphi 0, %s46
    %s47 = sphi 0, %s44
    %s48 = sphi 0, %s47
    %s64 = sphi 0, %s48
    %s70 = sphi 0, %s72
    %s73 = sphi 0, %s70
    %s74 = sphi 0, %s73
    %s90 = sphi 0, %s74
  $region4: #{encoder_forward.12} parent=0 // loop_header_branch
    %11 = sbr.rel (%p9) target = $region8
  $region5: #{encoder_forward.12} parent=0 // loop_body
    %s13 = ssub.s32 %s8, 1
    %s14 = ssub.s32 %s8, 2
    %s15 = sadd.s32 %s8, 1
    %s16 = ssub.s32 %s8, %s15
    %p17 = scmp.eq.s32.totalorder %s16, 0
    %s19 = sadd.s32 %s18, 1
    %s20 = scalar_select %p17, %s18, %s19
    %p23 = pneg %p17
    %p24 = scmp.eq.s32.totalorder %s8, 1
    %p25 = por %p23, %p24
    %p26 = scmp.ne.s32.totalorder %s18, %s21
    %p27 = scmp.eq.s32.totalorder %s8, 0
    %p28 = por %p26, %p27
    %p29 = scmp.ne.s32.totalorder %s18, %s21
    %p30 = scmp.eq.s32.totalorder %s13, 1
    %p31 = por %p29, %p30
    %p32 = scmp.ne.s32.totalorder %s21, %s22
    %p33 = scmp.eq.s32.totalorder %s13, 0
    %p34 = por %p32, %p33
    %p35 = scmp.ne.s32.totalorder %s21, %s22
    %p36 = scmp.eq.s32.totalorder %s14, 1
    %p37 = por %p35, %p36
    %p39 = scmp.ne.s32.totalorder %s22, %s38
    %p40 = scmp.eq.s32.totalorder %s14, 0
    %p41 = por %p39, %p40
    %s42 = ssub.s32 %s8, %s15
    %p43 = scmp.eq.s32.totalorder %s42, 0
    %s45 = sadd.s32 %s44, 1
    %s46 = scalar_select %p43, %s44, %s45
    %p49 = pneg %p43
    %p50 = scmp.eq.s32.totalorder %s8, 1
    %p51 = por %p49, %p50
    %p52 = scmp.ne.s32.totalorder %s44, %s47
    %p53 = scmp.eq.s32.totalorder %s8, 0
    %p54 = por %p52, %p53
    %p55 = scmp.ne.s32.totalorder %s44, %s47
    %p56 = scmp.eq.s32.totalorder %s13, 1
    %p57 = por %p55, %p56
    %p58 = scmp.ne.s32.totalorder %s47, %s48
    %p59 = scmp.eq.s32.totalorder %s13, 0
    %p60 = por %p58, %p59
    %p61 = scmp.ne.s32.totalorder %s47, %s48
    %p62 = scmp.eq.s32.totalorder %s14, 1
    %p63 = por %p61, %p62
    %p65 = scmp.ne.s32.totalorder %s48, %s64
    %p66 = scmp.eq.s32.totalorder %s14, 0
    %p67 = por %p65, %p66
    %s68 = ssub.s32 %s8, %s15
    %p69 = scmp.eq.s32.totalorder %s68, 0
    %s71 = sadd.s32 %s70, 1
    %s72 = scalar_select %p69, %s70, %s71
    %p75 = pneg %p69
    %p76 = scmp.eq.s32.totalorder %s8, 1
    %p77 = por %p75, %p76
    %p78 = scmp.ne.s32.totalorder %s70, %s73
    %p79 = scmp.eq.s32.totalorder %s8, 0
    %p80 = por %p78, %p79
    %p81 = scmp.ne.s32.totalorder %s70, %s73
    %p82 = scmp.eq.s32.totalorder %s13, 1
    %p83 = por %p81, %p82
    %p84 = scmp.ne.s32.totalorder %s73, %s74
    %p85 = scmp.eq.s32.totalorder %s13, 0
    %p86 = por %p84, %p85
    %p87 = scmp.ne.s32.totalorder %s73, %s74
    %p88 = scmp.eq.s32.totalorder %s14, 1
    %p89 = por %p87, %p88
    %p91 = scmp.ne.s32.totalorder %s74, %s90
    %p92 = scmp.eq.s32.totalorder %s14, 0
    %p93 = por %p91, %p92
    %p94 = scmp.le.s32.totalorder 1, %s8
    %p95 = scmp.lt.s32.totalorder %s8, 3
    %p96 = pnand %p94, %p95
    %p97 = pneg %p96
    // Predicated region
    $region9: #{encoder_forward.12} parent=5 // pred_check
      _
    $region10: #{encoder_forward.12} parent=5 // pred_check_branch
      %99 = sbr.rel (%p96) target = $region12
    $region11: #{encoder_forward.12} parent=5 // pred_region
      %s100 = ssub.s32 %s8, 1
    $region12: #{encoder_forward.12} parent=5 // pred_fallthru
      _
    %p101 = scmp.lt.s32.totalorder %s8, 2
    // Predicated region
    $region13: #{encoder_forward.12} parent=5 // pred_check
      %p102 = pneg %p101
    $region14: #{encoder_forward.12} parent=5 // pred_check_branch
      %104 = sbr.rel (%p102) target = $region16
    $region15: #{encoder_forward.12} parent=5 // pred_region
      // Predicated region
      $region17: #{encoder_forward.12} parent=15 // pred_check
        %p105 = pneg %p28
      $region18: #{encoder_forward.12} parent=15 // pred_check_branch
        %107 = sbr.rel (%p105) target = $region20
      $region19: #{encoder_forward.12} parent=15 // pred_region
        %p108 = scmp.lt.s32.totalorder %s8, 1
        %s109 = scalar_select %p108, %s8, 1
        %s110 = smul.addr %s109, 8
        %s111 = scalar_lea.vmem %s0, %s110
      $region20: #{encoder_forward.12} parent=15 // pred_fallthru
        _
      // Predicated region
      $region21: #{encoder_forward.12} parent=15 // pred_check
        %p112 = pneg %p54
      $region22: #{encoder_forward.12} parent=15 // pred_check_branch
        %114 = sbr.rel (%p112) target = $region24
      $region23: #{encoder_forward.12} parent=15 // pred_region
        %p115 = scmp.lt.s32.totalorder %s8, 1
        %s116 = scalar_select %p115, %s8, 1
        %s117 = scalar_lea.vmem %s1, %s116
      $region24: #{encoder_forward.12} parent=15 // pred_fallthru
        _
    $region16: #{encoder_forward.12} parent=5 // pred_fallthru
      _
    %p118 = scmp.le.s32.totalorder 1, %s8
    %p119 = scmp.lt.s32.totalorder %s8, 3
    %p120 = pnand %p118, %p119
    %p121 = pneg %p120
    // Predicated region
    $region25: #{encoder_forward.12} parent=5 // pred_check
      _
    $region26: #{encoder_forward.12} parent=5 // pred_check_branch
      %123 = sbr.rel (%p120) target = $region28
    $region27: #{encoder_forward.12} parent=5 // pred_region
      %s124 = ssub.s32 %s8, 1
      %p125 = scmp.lt.s32.totalorder %s13, 1
      %s126 = scalar_select %p125, %s13, 1
      %s127 = smul.addr %s126, 8
      %s128 = scalar_lea.vmem %s0, %s127
      %p129 = pneg %p34
      %p130 = pneg %p31
      %p131 = scmp.lt.s32.totalorder %s13, 1
      %s132 = scalar_select %p131, %s13, 1
      %s133 = scalar_lea.vmem %s1, %s132
      %p134 = pneg %p60
      %p135 = pneg %p57
      %p136 = pneg %p86
      %p137 = pneg %p83
      %p138 = scmp.lt.s32.totalorder %s13, 1
      %s139 = scalar_select %p138, %s13, 1
      %s140 = smul.addr %s139, 8
      %s141 = scalar_lea.vmem %s2, %s140
      %p142 = scmp.lt.s32.totalorder %s13, 1
      %s143 = scalar_select %p142, %s13, 1
      %s144 = smul.addr %s143, 8
      %s145 = scalar_lea.vmem %s0, %s144
      %p146 = scmp.lt.s32.totalorder %s13, 1
      %s147 = scalar_select %p146, %s13, 1
      %s148 = scalar_lea.vmem %s1, %s147
      %p149 = scmp.lt.s32.totalorder %s13, 1
      %s150 = scalar_select %p149, %s13, 1
      %s151 = smul.addr %s150, 8
      %s152 = scalar_lea.vmem %s2, %s151
      %v153 = vld [vmem:[%s145] sm:$0xff]
      %v154 = vld [vmem:[%s148] sm:$0x1]
      %156 = vrot.lane.b32.xlu0 %v153, 96
      %v157 = vpop.permute.xlu0 %156
      %vm158 = vcmask 64512
      %v159 = vsel %vm158, %v153, 0
      %v161 = vsel %vm158, %v157, 0
      %163 = vmatprep.subr.mxu0 0.0
      %164 = vmatpush1.xpose.msra.mxu0 0.0
      %165 = vmatprep.subr.mxu0 0.0
      %166 = vmatpush1.xpose.msra.mxu0 0.0
      %167 = vmatprep.subr.mxu0 0.0
      %168 = vmatpush1.xpose.msra.mxu0 0.0
      %169 = vmatprep.subr.mxu0 0.0
      %170 = vmatpush1.xpose.msra.mxu0 0.0
      %171 = vmatprep.subr.mxu0 0.0
      %172 = vmatpush1.xpose.msra.mxu0 0.0
      %173 = vmatprep.subr.mxu0 0.0
      %174 = vmatpush1.xpose.msra.mxu0 0.0
      %175 = vmatprep.subr.mxu0 0.0
      %176 = vmatpush1.xpose.msra.mxu0 0.0
      %177 = vmatprep.subr.mxu0 0.0
      %178 = vmatpush1.xpose.msra.mxu0 0.0
      %179 = vmatprep.subr.mxu0 0.0
      %180 = vmatpush1.xpose.msra.mxu0 0.0
      %181 = vmatprep.subr.mxu0 0.0
      %182 = vmatpush1.xpose.msra.mxu0 0.0
      %183 = vmatprep.subr.mxu0 0.0
      %184 = vmatpush1.xpose.msra.mxu0 0.0
      %185 = vmatprep.subr.mxu0 0.0
      %186 = vmatpush1.xpose.msra.mxu0 0.0
      %187 = vmatprep.subr.mxu0 0.0
      %188 = vmatpush1.xpose.msra.mxu0 0.0
      %189 = vmatprep.subr.mxu0 0.0
      %190 = vmatpush1.xpose.msra.mxu0 0.0
      %191 = vmatprep.subr.mxu0 0.0
      %192 = vmatpush1.xpose.msra.mxu0 0.0
      %193 = vmatprep.subr.mxu0 0.0
      %194 = vmatpush1.xpose.msra.mxu0 %v161
      %195 = vmatprep.subr.mxu0 0.0
      %196 = vmatpush2.xpose.msra.mxu0 0.0
      %197 = vmatprep.subr.mxu0 0.0
      %198 = vmatpush2.xpose.msra.mxu0 0.0
      %199 = vmatprep.subr.mxu0 0.0
      %200 = vmatpush2.xpose.msra.mxu0 0.0
      %201 = vmatprep.subr.mxu0 0.0
      %202 = vmatpush2.xpose.msra.mxu0 0.0
      %203 = vmatprep.subr.mxu0 0.0
      %204 = vmatpush2.xpose.msra.mxu0 0.0
      %205 = vmatprep.subr.mxu0 0.0
      %206 = vmatpush2.xpose.msra.mxu0 0.0
      %207 = vmatprep.subr.mxu0 0.0
      %208 = vmatpush2.xpose.msra.mxu0 0.0
      %209 = vmatprep.subr.mxu0 0.0
      %210 = vmatpush2.xpose.msra.mxu0 0.0
      %211 = vmatprep.subr.mxu0 0.0
      %212 = vmatpush2.xpose.msra.mxu0 0.0
      %213 = vmatprep.subr.mxu0 0.0
      %214 = vmatpush2.xpose.msra.mxu0 0.0
      %215 = vmatprep.subr.mxu0 0.0
      %216 = vmatpush2.xpose.msra.mxu0 0.0
      %217 = vmatprep.subr.mxu0 0.0
      %218 = vmatpush2.xpose.msra.mxu0 0.0
      %219 = vmatprep.subr.mxu0 0.0
      %220 = vmatpush2.xpose.msra.mxu0 0.0
      %221 = vmatprep.subr.mxu0 0.0
      %222 = vmatpush2.xpose.msra.mxu0 0.0
      %223 = vmatprep.subr.mxu0 0.0
      %224 = vmatpush2.xpose.msra.mxu0 0.0
      %225 = vmatprep.subr.mxu0 0.0
      %226 = vmatpush2.xpose.msra.mxu0 0.0
      %227 = vmatprep.mubr.f32.mxu0 0.0
      %228 = vmatmul.mubr.f32.gmra.mxu0 %v159
      %v229 = vpop.f32.mrf.mxu0
      %v230 = vadd.f32 0.0, %v229
      %v231 = vpop.f32.mrf.mxu0
      %232 = vdwg.mxu0
      %vm233 = vcmp.eq.s32.totalorder %v154, 0
      %v234 = vsel %vm233, 1, 0
      %v235 = vlaneseq
      %v236 = vshrl.u32 %v235, 7
      %v237 = vsub.s32 0, %v236
      %v238 = vrot.slane %v234, %v237
      %vm239 = vcmp.eq.s32.totalorder %v238, 1
      %v240 = vsel %vm239, -1e+09, %v230
      %v241 = vsel %vm158, %v240, -inf
      %242 = vmax.xlane.f32.xlu0 %v241
      %v243 = vpop.xlane.xlu0 %242
      %v244 = vsub.f32 %v240, %v243
      %v245 = vmul.f32 %v244, 1.442695
      %v246 = vpow.pop %v245
      %v247 = vsel %vm158, %v246, 0.0
      %248 = vadd.xlane.f32.xlu0 %v247
      %v249 = vpop.xlane.xlu0 %248
      %v250 = vrcp.pop %v249
      %v251 = vmul.f32 %v246, %v250
      %252 = vrot.lane.b32.xlu0 %v153, 64
      %v253 = vpop.permute.xlu0 %252
      %v256 = vsel %vm158, %v251, 0
      %258 = vmatprep.subr.mxu0 0.0
      %259 = vmatpush1.msra.mxu0 0.0
      %260 = vmatprep.subr.mxu0 0.0
      %261 = vmatpush1.msra.mxu0 0.0
      %262 = vmatprep.subr.mxu0 0.0
      %263 = vmatpush1.msra.mxu0 0.0
      %264 = vmatprep.subr.mxu0 0.0
      %265 = vmatpush1.msra.mxu0 0.0
      %266 = vmatprep.subr.mxu0 0.0
      %267 = vmatpush1.msra.mxu0 0.0
      %268 = vmatprep.subr.mxu0 0.0
      %269 = vmatpush1.msra.mxu0 0.0
      %270 = vmatprep.subr.mxu0 0.0
      %271 = vmatpush1.msra.mxu0 0.0
      %272 = vmatprep.subr.mxu0 0.0
      %273 = vmatpush1.msra.mxu0 0.0
      %274 = vmatprep.subr.mxu0 0.0
      %275 = vmatpush1.msra.mxu0 0.0
      %276 = vmatprep.subr.mxu0 0.0
      %277 = vmatpush1.msra.mxu0 0.0
      %278 = vmatprep.subr.mxu0 0.0
      %279 = vmatpush1.msra.mxu0 0.0
      %280 = vmatprep.subr.mxu0 0.0
      %281 = vmatpush1.msra.mxu0 0.0
      %282 = vmatprep.subr.mxu0 0.0
      %283 = vmatpush1.msra.mxu0 0.0
      %284 = vmatprep.subr.mxu0 0.0
      %285 = vmatpush1.msra.mxu0 0.0
      %286 = vmatprep.subr.mxu0 0.0
      %287 = vmatpush1.msra.mxu0 0.0
      %288 = vmatprep.subr.mxu0 0.0
      %289 = vmatpush1.msra.mxu0 %v253
      %290 = vmatprep.subr.mxu0 0.0
      %291 = vmatpush2.msra.mxu0 0.0
      %292 = vmatprep.subr.mxu0 0.0
      %293 = vmatpush2.msra.mxu0 0.0
      %294 = vmatprep.subr.mxu0 0.0
      %295 = vmatpush2.msra.mxu0 0.0
      %296 = vmatprep.subr.mxu0 0.0
      %297 = vmatpush2.msra.mxu0 0.0
      %298 = vmatprep.subr.mxu0 0.0
      %299 = vmatpush2.msra.mxu0 0.0
      %300 = vmatprep.subr.mxu0 0.0
      %301 = vmatpush2.msra.mxu0 0.0
      %302 = vmatprep.subr.mxu0 0.0
      %303 = vmatpush2.msra.mxu0 0.0
      %304 = vmatprep.subr.mxu0 0.0
      %305 = vmatpush2.msra.mxu0 0.0
      %306 = vmatprep.subr.mxu0 0.0
      %307 = vmatpush2.msra.mxu0 0.0
      %308 = vmatprep.subr.mxu0 0.0
      %309 = vmatpush2.msra.mxu0 0.0
      %310 = vmatprep.subr.mxu0 0.0
      %311 = vmatpush2.msra.mxu0 0.0
      %312 = vmatprep.subr.mxu0 0.0
      %313 = vmatpush2.msra.mxu0 0.0
      %314 = vmatprep.subr.mxu0 0.0
      %315 = vmatpush2.msra.mxu0 0.0
      %316 = vmatprep.subr.mxu0 0.0
      %317 = vmatpush2.msra.mxu0 0.0
      %318 = vmatprep.subr.mxu0 0.0
      %319 = vmatpush2.msra.mxu0 0.0
      %320 = vmatprep.subr.mxu0 0.0
      %321 = vmatpush2.msra.mxu0 0.0
      %322 = vmatprep.mubr.f32.mxu0 0.0
      %323 = vmatmul.mubr.f32.gmra.mxu0 %v256
      %v324 = vpop.f32.mrf.mxu0
      %v325 = vadd.f32 0.0, %v324
      %v326 = vpop.f32.mrf.mxu0
      %327 = vdwg.mxu0
      %328 = vst.msk [vmem:[%s152] sm:$0xff] %vm158, %v325
      %329 = vrot.lane.b32.xlu0 %v153, 120
      %v330 = vpop.permute.xlu0 %329
      %331 = vrot.lane.b32.xlu0 %v153, 88
      %v332 = vpop.permute.xlu0 %331
      %v333 = vsel %vm158, %v330, 0
      %v335 = vsel %vm158, %v332, 0
      %337 = vmatprep.subr.mxu0 0.0
      %338 = vmatpush1.xpose.msra.mxu0 0.0
      %339 = vmatprep.subr.mxu0 0.0
      %340 = vmatpush1.xpose.msra.mxu0 0.0
      %341 = vmatprep.subr.mxu0 0.0
      %342 = vmatpush1.xpose.msra.mxu0 0.0
      %343 = vmatprep.subr.mxu0 0.0
      %344 = vmatpush1.xpose.msra.mxu0 0.0
      %345 = vmatprep.subr.mxu0 0.0
      %346 = vmatpush1.xpose.msra.mxu0 0.0
      %347 = vmatprep.subr.mxu0 0.0
      %348 = vmatpush1.xpose.msra.mxu0 0.0
      %349 = vmatprep.subr.mxu0 0.0
      %350 = vmatpush1.xpose.msra.mxu0 0.0
      %351 = vmatprep.subr.mxu0 0.0
      %352 = vmatpush1.xpose.msra.mxu0 0.0
      %353 = vmatprep.subr.mxu0 0.0
      %354 = vmatpush1.xpose.msra.mxu0 0.0
      %355 = vmatprep.subr.mxu0 0.0
      %356 = vmatpush1.xpose.msra.mxu0 0.0
      %357 = vmatprep.subr.mxu0 0.0
      %358 = vmatpush1.xpose.msra.mxu0 0.0
      %359 = vmatprep.subr.mxu0 0.0
      %360 = vmatpush1.xpose.msra.mxu0 0.0
      %361 = vmatprep.subr.mxu0 0.0
      %362 = vmatpush1.xpose.msra.mxu0 0.0
      %363 = vmatprep.subr.mxu0 0.0
      %364 = vmatpush1.xpose.msra.mxu0 0.0
      %365 = vmatprep.subr.mxu0 0.0
      %366 = vmatpush1.xpose.msra.mxu0 0.0
      %367 = vmatprep.subr.mxu0 0.0
      %368 = vmatpush1.xpose.msra.mxu0 %v335
      %369 = vmatprep.subr.mxu0 0.0
      %370 = vmatpush2.xpose.msra.mxu0 0.0
      %371 = vmatprep.subr.mxu0 0.0
      %372 = vmatpush2.xpose.msra.mxu0 0.0
      %373 = vmatprep.subr.mxu0 0.0
      %374 = vmatpush2.xpose.msra.mxu0 0.0
      %375 = vmatprep.subr.mxu0 0.0
      %376 = vmatpush2.xpose.msra.mxu0 0.0
      %377 = vmatprep.subr.mxu0 0.0
      %378 = vmatpush2.xpose.msra.mxu0 0.0
      %379 = vmatprep.subr.mxu0 0.0
      %380 = vmatpush2.xpose.msra.mxu0 0.0
      %381 = vmatprep.subr.mxu0 0.0
      %382 = vmatpush2.xpose.msra.mxu0 0.0
      %383 = vmatprep.subr.mxu0 0.0
      %384 = vmatpush2.xpose.msra.mxu0 0.0
      %385 = vmatprep.subr.mxu0 0.0
      %386 = vmatpush2.xpose.msra.mxu0 0.0
      %387 = vmatprep.subr.mxu0 0.0
      %388 = vmatpush2.xpose.msra.mxu0 0.0
      %389 = vmatprep.subr.mxu0 0.0
      %390 = vmatpush2.xpose.msra.mxu0 0.0
      %391 = vmatprep.subr.mxu0 0.0
      %392 = vmatpush2.xpose.msra.mxu0 0.0
      %393 = vmatprep.subr.mxu0 0.0
      %394 = vmatpush2.xpose.msra.mxu0 0.0
      %395 = vmatprep.subr.mxu0 0.0
      %396 = vmatpush2.xpose.msra.mxu0 0.0
      %397 = vmatprep.subr.mxu0 0.0
      %398 = vmatpush2.xpose.msra.mxu0 0.0
      %399 = vmatprep.subr.mxu0 0.0
      %400 = vmatpush2.xpose.msra.mxu0 0.0
      %401 = vmatprep.mubr.f32.mxu0 0.0
      %402 = vmatmul.mubr.f32.gmra.mxu0 %v333
      %v403 = vpop.f32.mrf.mxu0
      %v404 = vadd.f32 0.0, %v403
      %v405 = vpop.f32.mrf.mxu0
      %406 = vdwg.mxu0
      %v407 = vsel %vm239, -1e+09, %v404
      %v408 = vsel %vm158, %v407, -inf
      %409 = vmax.xlane.f32.xlu0 %v408
      %v410 = vpop.xlane.xlu0 %409
      %v411 = vsub.f32 %v407, %v410
      %v412 = vmul.f32 %v411, 1.442695
      %v413 = vpow.pop %v412
      %v414 = vsel %vm158, %v413, 0.0
      %415 = vadd.xlane.f32.xlu0 %v414
      %v416 = vpop.xlane.xlu0 %415
      %v417 = vrcp.pop %v416
      %v418 = vmul.f32 %v413, %v417
      %419 = vrot.lane.b32.xlu0 %v153, 56
      %v420 = vpop.permute.xlu0 %419
      %v423 = vsel %vm158, %v418, 0
      %425 = vmatprep.subr.mxu0 0.0
      %426 = vmatpush1.msra.mxu0 0.0
      %427 = vmatprep.subr.mxu0 0.0
      %428 = vmatpush1.msra.mxu0 0.0
      %429 = vmatprep.subr.mxu0 0.0
      %430 = vmatpush1.msra.mxu0 0.0
      %431 = vmatprep.subr.mxu0 0.0
      %432 = vmatpush1.msra.mxu0 0.0
      %433 = vmatprep.subr.mxu0 0.0
      %434 = vmatpush1.msra.mxu0 0.0
      %435 = vmatprep.subr.mxu0 0.0
      %436 = vmatpush1.msra.mxu0 0.0
      %437 = vmatprep.subr.mxu0 0.0
      %438 = vmatpush1.msra.mxu0 0.0
      %439 = vmatprep.subr.mxu0 0.0
      %440 = vmatpush1.msra.mxu0 0.0
      %441 = vmatprep.subr.mxu0 0.0
      %442 = vmatpush1.msra.mxu0 0.0
      %443 = vmatprep.subr.mxu0 0.0
      %444 = vmatpush1.msra.mxu0 0.0
      %445 = vmatprep.subr.mxu0 0.0
      %446 = vmatpush1.msra.mxu0 0.0
      %447 = vmatprep.subr.mxu0 0.0
      %448 = vmatpush1.msra.mxu0 0.0
      %449 = vmatprep.subr.mxu0 0.0
      %450 = vmatpush1.msra.mxu0 0.0
      %451 = vmatprep.subr.mxu0 0.0
      %452 = vmatpush1.msra.mxu0 0.0
      %453 = vmatprep.subr.mxu0 0.0
      %454 = vmatpush1.msra.mxu0 0.0
      %455 = vmatprep.subr.mxu0 0.0
      %456 = vmatpush1.msra.mxu0 %v420
      %457 = vmatprep.subr.mxu0 0.0
      %458 = vmatpush2.msra.mxu0 0.0
      %459 = vmatprep.subr.mxu0 0.0
      %460 = vmatpush2.msra.mxu0 0.0
      %461 = vmatprep.subr.mxu0 0.0
      %462 = vmatpush2.msra.mxu0 0.0
      %463 = vmatprep.subr.mxu0 0.0
      %464 = vmatpush2.msra.mxu0 0.0
      %465 = vmatprep.subr.mxu0 0.0
      %466 = vmatpush2.msra.mxu0 0.0
      %467 = vmatprep.subr.mxu0 0.0
      %468 = vmatpush2.msra.mxu0 0.0
      %469 = vmatprep.subr.mxu0 0.0
      %470 = vmatpush2.msra.mxu0 0.0
      %471 = vmatprep.subr.mxu0 0.0
      %472 = vmatpush2.msra.mxu0 0.0
      %473 = vmatprep.subr.mxu0 0.0
      %474 = vmatpush2.msra.mxu0 0.0
      %475 = vmatprep.subr.mxu0 0.0
      %476 = vmatpush2.msra.mxu0 0.0
      %477 = vmatprep.subr.mxu0 0.0
      %478 = vmatpush2.msra.mxu0 0.0
      %479 = vmatprep.subr.mxu0 0.0
      %480 = vmatpush2.msra.mxu0 0.0
      %481 = vmatprep.subr.mxu0 0.0
      %482 = vmatpush2.msra.mxu0 0.0
      %483 = vmatprep.subr.mxu0 0.0
      %484 = vmatpush2.msra.mxu0 0.0
      %485 = vmatprep.subr.mxu0 0.0
      %486 = vmatpush2.msra.mxu0 0.0
      %487 = vmatprep.subr.mxu0 0.0
      %488 = vmatpush2.msra.mxu0 0.0
      %489 = vmatprep.mubr.f32.mxu0 0.0
      %490 = vmatmul.mubr.f32.gmra.mxu0 %v423
      %v491 = vpop.f32.mrf.mxu0
      %v492 = vadd.f32 0.0, %v491
      %v493 = vpop.f32.mrf.mxu0
      %494 = vdwg.mxu0
      %496 = vrot.lane.b32.xlu0 %v492, 8
      %v497 = vpop.permute.xlu0 %496
      %vm499 = vcmask 130112
      %500 = vst.msk [vmem:[%s152] sm:$0xff] %vm499, %v497
      %501 = vrot.lane.b32.xlu0 %v153, 112
      %v502 = vpop.permute.xlu0 %501
      %503 = vrot.lane.b32.xlu0 %v153, 80
      %v504 = vpop.permute.xlu0 %503
      %v505 = vsel %vm158, %v502, 0
      %v507 = vsel %vm158, %v504, 0
      %509 = vmatprep.subr.mxu0 0.0
      %510 = vmatpush1.xpose.msra.mxu0 0.0
      %511 = vmatprep.subr.mxu0 0.0
      %512 = vmatpush1.xpose.msra.mxu0 0.0
      %513 = vmatprep.subr.mxu0 0.0
      %514 = vmatpush1.xpose.msra.mxu0 0.0
      %515 = vmatprep.subr.mxu0 0.0
      %516 = vmatpush1.xpose.msra.mxu0 0.0
      %517 = vmatprep.subr.mxu0 0.0
      %518 = vmatpush1.xpose.msra.mxu0 0.0
      %519 = vmatprep.subr.mxu0 0.0
      %520 = vmatpush1.xpose.msra.mxu0 0.0
      %521 = vmatprep.subr.mxu0 0.0
      %522 = vmatpush1.xpose.msra.mxu0 0.0
      %523 = vmatprep.subr.mxu0 0.0
      %524 = vmatpush1.xpose.msra.mxu0 0.0
      %525 = vmatprep.subr.mxu0 0.0
      %526 = vmatpush1.xpose.msra.mxu0 0.0
      %527 = vmatprep.subr.mxu0 0.0
      %528 = vmatpush1.xpose.msra.mxu0 0.0
      %529 = vmatprep.subr.mxu0 0.0
      %530 = vmatpush1.xpose.msra.mxu0 0.0
      %531 = vmatprep.subr.mxu0 0.0
      %532 = vmatpush1.xpose.msra.mxu0 0.0
      %533 = vmatprep.subr.mxu0 0.0
      %534 = vmatpush1.xpose.msra.mxu0 0.0
      %535 = vmatprep.subr.mxu0 0.0
      %536 = vmatpush1.xpose.msra.mxu0 0.0
      %537 = vmatprep.subr.mxu0 0.0
      %538 = vmatpush1.xpose.msra.mxu0 0.0
      %539 = vmatprep.subr.mxu0 0.0
      %540 = vmatpush1.xpose.msra.mxu0 %v507
      %541 = vmatprep.subr.mxu0 0.0
      %542 = vmatpush2.xpose.msra.mxu0 0.0
      %543 = vmatprep.subr.mxu0 0.0
      %544 = vmatpush2.xpose.msra.mxu0 0.0
      %545 = vmatprep.subr.mxu0 0.0
      %546 = vmatpush2.xpose.msra.mxu0 0.0
      %547 = vmatprep.subr.mxu0 0.0
      %548 = vmatpush2.xpose.msra.mxu0 0.0
      %549 = vmatprep.subr.mxu0 0.0
      %550 = vmatpush2.xpose.msra.mxu0 0.0
      %551 = vmatprep.subr.mxu0 0.0
      %552 = vmatpush2.xpose.msra.mxu0 0.0
      %553 = vmatprep.subr.mxu0 0.0
      %554 = vmatpush2.xpose.msra.mxu0 0.0
      %555 = vmatprep.subr.mxu0 0.0
      %556 = vmatpush2.xpose.msra.mxu0 0.0
      %557 = vmatprep.subr.mxu0 0.0
      %558 = vmatpush2.xpose.msra.mxu0 0.0
      %559 = vmatprep.subr.mxu0 0.0
      %560 = vmatpush2.xpose.msra.mxu0 0.0
      %561 = vmatprep.subr.mxu0 0.0
      %562 = vmatpush2.xpose.msra.mxu0 0.0
      %563 = vmatprep.subr.mxu0 0.0
      %564 = vmatpush2.xpose.msra.mxu0 0.0
      %565 = vmatprep.subr.mxu0 0.0
      %566 = vmatpush2.xpose.msra.mxu0 0.0
      %567 = vmatprep.subr.mxu0 0.0
      %568 = vmatpush2.xpose.msra.mxu0 0.0
      %569 = vmatprep.subr.mxu0 0.0
      %570 = vmatpush2.xpose.msra.mxu0 0.0
      %571 = vmatprep.subr.mxu0 0.0
      %572 = vmatpush2.xpose.msra.mxu0 0.0
      %573 = vmatprep.mubr.f32.mxu0 0.0
      %574 = vmatmul.mubr.f32.gmra.mxu0 %v505
      %v575 = vpop.f32.mrf.mxu0
      %v576 = vadd.f32 0.0, %v575
      %v577 = vpop.f32.mrf.mxu0
      %578 = vdwg.mxu0
      %v579 = vsel %vm239, -1e+09, %v576
      %v580 = vsel %vm158, %v579, -inf
      %581 = vmax.xlane.f32.xlu0 %v580
      %v582 = vpop.xlane.xlu0 %581
      %v583 = vsub.f32 %v579, %v582
      %v584 = vmul.f32 %v583, 1.442695
      %v585 = vpow.pop %v584
      %v586 = vsel %vm158, %v585, 0.0
      %587 = vadd.xlane.f32.xlu0 %v586
      %v588 = vpop.xlane.xlu0 %587
      %v589 = vrcp.pop %v588
      %v590 = vmul.f32 %v585, %v589
      %591 = vrot.lane.b32.xlu0 %v153, 48
      %v592 = vpop.permute.xlu0 %591
      %v595 = vsel %vm158, %v590, 0
      %597 = vmatprep.subr.mxu0 0.0
      %598 = vmatpush1.msra.mxu0 0.0
      %599 = vmatprep.subr.mxu0 0.0
      %600 = vmatpush1.msra.mxu0 0.0
      %601 = vmatprep.subr.mxu0 0.0
      %602 = vmatpush1.msra.mxu0 0.0
      %603 = vmatprep.subr.mxu0 0.0
      %604 = vmatpush1.msra.mxu0 0.0
      %605 = vmatprep.subr.mxu0 0.0
      %606 = vmatpush1.msra.mxu0 0.0
      %607 = vmatprep.subr.mxu0 0.0
      %608 = vmatpush1.msra.mxu0 0.0
      %609 = vmatprep.subr.mxu0 0.0
      %610 = vmatpush1.msra.mxu0 0.0
      %611 = vmatprep.subr.mxu0 0.0
      %612 = vmatpush1.msra.mxu0 0.0
      %613 = vmatprep.subr.mxu0 0.0
      %614 = vmatpush1.msra.mxu0 0.0
      %615 = vmatprep.subr.mxu0 0.0
      %616 = vmatpush1.msra.mxu0 0.0
      %617 = vmatprep.subr.mxu0 0.0
      %618 = vmatpush1.msra.mxu0 0.0
      %619 = vmatprep.subr.mxu0 0.0
      %620 = vmatpush1.msra.mxu0 0.0
      %621 = vmatprep.subr.mxu0 0.0
      %622 = vmatpush1.msra.mxu0 0.0
      %623 = vmatprep.subr.mxu0 0.0
      %624 = vmatpush1.msra.mxu0 0.0
      %625 = vmatprep.subr.mxu0 0.0
      %626 = vmatpush1.msra.mxu0 0.0
      %627 = vmatprep.subr.mxu0 0.0
      %628 = vmatpush1.msra.mxu0 %v592
      %629 = vmatprep.subr.mxu0 0.0
      %630 = vmatpush2.msra.mxu0 0.0
      %631 = vmatprep.subr.mxu0 0.0
      %632 = vmatpush2.msra.mxu0 0.0
      %633 = vmatprep.subr.mxu0 0.0
      %634 = vmatpush2.msra.mxu0 0.0
      %635 = vmatprep.subr.mxu0 0.0
      %636 = vmatpush2.msra.mxu0 0.0
      %637 = vmatprep.subr.mxu0 0.0
      %638 = vmatpush2.msra.mxu0 0.0
      %639 = vmatprep.subr.mxu0 0.0
      %640 = vmatpush2.msra.mxu0 0.0
      %641 = vmatprep.subr.mxu0 0.0
      %642 = vmatpush2.msra.mxu0 0.0
      %643 = vmatprep.subr.mxu0 0.0
      %644 = vmatpush2.msra.mxu0 0.0
      %645 = vmatprep.subr.mxu0 0.0
      %646 = vmatpush2.msra.mxu0 0.0
      %647 = vmatprep.subr.mxu0 0.0
      %648 = vmatpush2.msra.mxu0 0.0
      %649 = vmatprep.subr.mxu0 0.0
      %650 = vmatpush2.msra.mxu0 0.0
      %651 = vmatprep.subr.mxu0 0.0
      %652 = vmatpush2.msra.mxu0 0.0
      %653 = vmatprep.subr.mxu0 0.0
      %654 = vmatpush2.msra.mxu0 0.0
      %655 = vmatprep.subr.mxu0 0.0
      %656 = vmatpush2.msra.mxu0 0.0
      %657 = vmatprep.subr.mxu0 0.0
      %658 = vmatpush2.msra.mxu0 0.0
      %659 = vmatprep.subr.mxu0 0.0
      %660 = vmatpush2.msra.mxu0 0.0
      %661 = vmatprep.mubr.f32.mxu0 0.0
      %662 = vmatmul.mubr.f32.gmra.mxu0 %v595
      %v663 = vpop.f32.mrf.mxu0
      %v664 = vadd.f32 0.0, %v663
      %v665 = vpop.f32.mrf.mxu0
      %666 = vdwg.mxu0
      %668 = vrot.lane.b32.xlu0 %v664, 16
      %v669 = vpop.permute.xlu0 %668
      %vm671 = vcmask 195712
      %672 = vst.msk [vmem:[%s152] sm:$0xff] %vm671, %v669
      %673 = vrot.lane.b32.xlu0 %v153, 104
      %v674 = vpop.permute.xlu0 %673
      %675 = vrot.lane.b32.xlu0 %v153, 72
      %v676 = vpop.permute.xlu0 %675
      %v677 = vsel %vm158, %v674, 0
      %v679 = vsel %vm158, %v676, 0
      %681 = vmatprep.subr.mxu0 0.0
      %682 = vmatpush1.xpose.msra.mxu0 0.0
      %683 = vmatprep.subr.mxu0 0.0
      %684 = vmatpush1.xpose.msra.mxu0 0.0
      %685 = vmatprep.subr.mxu0 0.0
      %686 = vmatpush1.xpose.msra.mxu0 0.0
      %687 = vmatprep.subr.mxu0 0.0
      %688 = vmatpush1.xpose.msra.mxu0 0.0
      %689 = vmatprep.subr.mxu0 0.0
      %690 = vmatpush1.xpose.msra.mxu0 0.0
      %691 = vmatprep.subr.mxu0 0.0
      %692 = vmatpush1.xpose.msra.mxu0 0.0
      %693 = vmatprep.subr.mxu0 0.0
      %694 = vmatpush1.xpose.msra.mxu0 0.0
      %695 = vmatprep.subr.mxu0 0.0
      %696 = vmatpush1.xpose.msra.mxu0 0.0
      %697 = vmatprep.subr.mxu0 0.0
      %698 = vmatpush1.xpose.msra.mxu0 0.0
      %699 = vmatprep.subr.mxu0 0.0
      %700 = vmatpush1.xpose.msra.mxu0 0.0
      %701 = vmatprep.subr.mxu0 0.0
      %702 = vmatpush1.xpose.msra.mxu0 0.0
      %703 = vmatprep.subr.mxu0 0.0
      %704 = vmatpush1.xpose.msra.mxu0 0.0
      %705 = vmatprep.subr.mxu0 0.0
      %706 = vmatpush1.xpose.msra.mxu0 0.0
      %707 = vmatprep.subr.mxu0 0.0
      %708 = vmatpush1.xpose.msra.mxu0 0.0
      %709 = vmatprep.subr.mxu0 0.0
      %710 = vmatpush1.xpose.msra.mxu0 0.0
      %711 = vmatprep.subr.mxu0 0.0
      %712 = vmatpush1.xpose.msra.mxu0 %v679
      %713 = vmatprep.subr.mxu0 0.0
      %714 = vmatpush2.xpose.msra.mxu0 0.0
      %715 = vmatprep.subr.mxu0 0.0
      %716 = vmatpush2.xpose.msra.mxu0 0.0
      %717 = vmatprep.subr.mxu0 0.0
      %718 = vmatpush2.xpose.msra.mxu0 0.0
      %719 = vmatprep.subr.mxu0 0.0
      %720 = vmatpush2.xpose.msra.mxu0 0.0
      %721 = vmatprep.subr.mxu0 0.0
      %722 = vmatpush2.xpose.msra.mxu0 0.0
      %723 = vmatprep.subr.mxu0 0.0
      %724 = vmatpush2.xpose.msra.mxu0 0.0
      %725 = vmatprep.subr.mxu0 0.0
      %726 = vmatpush2.xpose.msra.mxu0 0.0
      %727 = vmatprep.subr.mxu0 0.0
      %728 = vmatpush2.xpose.msra.mxu0 0.0
      %729 = vmatprep.subr.mxu0 0.0
      %730 = vmatpush2.xpose.msra.mxu0 0.0
      %731 = vmatprep.subr.mxu0 0.0
      %732 = vmatpush2.xpose.msra.mxu0 0.0
      %733 = vmatprep.subr.mxu0 0.0
      %734 = vmatpush2.xpose.msra.mxu0 0.0
      %735 = vmatprep.subr.mxu0 0.0
      %736 = vmatpush2.xpose.msra.mxu0 0.0
      %737 = vmatprep.subr.mxu0 0.0
      %738 = vmatpush2.xpose.msra.mxu0 0.0
      %739 = vmatprep.subr.mxu0 0.0
      %740 = vmatpush2.xpose.msra.mxu0 0.0
      %741 = vmatprep.subr.mxu0 0.0
      %742 = vmatpush2.xpose.msra.mxu0 0.0
      %743 = vmatprep.subr.mxu0 0.0
      %744 = vmatpush2.xpose.msra.mxu0 0.0
      %745 = vmatprep.mubr.f32.mxu0 0.0
      %746 = vmatmul.mubr.f32.gmra.mxu0 %v677
      %v747 = vpop.f32.mrf.mxu0
      %v748 = vadd.f32 0.0, %v747
      %v749 = vpop.f32.mrf.mxu0
      %750 = vdwg.mxu0
      %v751 = vsel %vm239, -1e+09, %v748
      %v752 = vsel %vm158, %v751, -inf
      %753 = vmax.xlane.f32.xlu0 %v752
      %v754 = vpop.xlane.xlu0 %753
      %v755 = vsub.f32 %v751, %v754
      %v756 = vmul.f32 %v755, 1.442695
      %v757 = vpow.pop %v756
      %v758 = vsel %vm158, %v757, 0.0
      %759 = vadd.xlane.f32.xlu0 %v758
      %v760 = vpop.xlane.xlu0 %759
      %v761 = vrcp.pop %v760
      %v762 = vmul.f32 %v757, %v761
      %763 = vrot.lane.b32.xlu0 %v153, 40
      %v764 = vpop.permute.xlu0 %763
      %v767 = vsel %vm158, %v762, 0
      %769 = vmatprep.subr.mxu0 0.0
      %770 = vmatpush1.msra.mxu0 0.0
      %771 = vmatprep.subr.mxu0 0.0
      %772 = vmatpush1.msra.mxu0 0.0
      %773 = vmatprep.subr.mxu0 0.0
      %774 = vmatpush1.msra.mxu0 0.0
      %775 = vmatprep.subr.mxu0 0.0
      %776 = vmatpush1.msra.mxu0 0.0
      %777 = vmatprep.subr.mxu0 0.0
      %778 = vmatpush1.msra.mxu0 0.0
      %779 = vmatprep.subr.mxu0 0.0
      %780 = vmatpush1.msra.mxu0 0.0
      %781 = vmatprep.subr.mxu0 0.0
      %782 = vmatpush1.msra.mxu0 0.0
      %783 = vmatprep.subr.mxu0 0.0
      %784 = vmatpush1.msra.mxu0 0.0
      %785 = vmatprep.subr.mxu0 0.0
      %786 = vmatpush1.msra.mxu0 0.0
      %787 = vmatprep.subr.mxu0 0.0
      %788 = vmatpush1.msra.mxu0 0.0
      %789 = vmatprep.subr.mxu0 0.0
      %790 = vmatpush1.msra.mxu0 0.0
      %791 = vmatprep.subr.mxu0 0.0
      %792 = vmatpush1.msra.mxu0 0.0
      %793 = vmatprep.subr.mxu0 0.0
      %794 = vmatpush1.msra.mxu0 0.0
      %795 = vmatprep.subr.mxu0 0.0
      %796 = vmatpush1.msra.mxu0 0.0
      %797 = vmatprep.subr.mxu0 0.0
      %798 = vmatpush1.msra.mxu0 0.0
      %799 = vmatprep.subr.mxu0 0.0
      %800 = vmatpush1.msra.mxu0 %v764
      %801 = vmatprep.subr.mxu0 0.0
      %802 = vmatpush2.msra.mxu0 0.0
      %803 = vmatprep.subr.mxu0 0.0
      %804 = vmatpush2.msra.mxu0 0.0
      %805 = vmatprep.subr.mxu0 0.0
      %806 = vmatpush2.msra.mxu0 0.0
      %807 = vmatprep.subr.mxu0 0.0
      %808 = vmatpush2.msra.mxu0 0.0
      %809 = vmatprep.subr.mxu0 0.0
      %810 = vmatpush2.msra.mxu0 0.0
      %811 = vmatprep.subr.mxu0 0.0
      %812 = vmatpush2.msra.mxu0 0.0
      %813 = vmatprep.subr.mxu0 0.0
      %814 = vmatpush2.msra.mxu0 0.0
      %815 = vmatprep.subr.mxu0 0.0
      %816 = vmatpush2.msra.mxu0 0.0
      %817 = vmatprep.subr.mxu0 0.0
      %818 = vmatpush2.msra.mxu0 0.0
      %819 = vmatprep.subr.mxu0 0.0
      %820 = vmatpush2.msra.mxu0 0.0
      %821 = vmatprep.subr.mxu0 0.0
      %822 = vmatpush2.msra.mxu0 0.0
      %823 = vmatprep.subr.mxu0 0.0
      %824 = vmatpush2.msra.mxu0 0.0
      %825 = vmatprep.subr.mxu0 0.0
      %826 = vmatpush2.msra.mxu0 0.0
      %827 = vmatprep.subr.mxu0 0.0
      %828 = vmatpush2.msra.mxu0 0.0
      %829 = vmatprep.subr.mxu0 0.0
      %830 = vmatpush2.msra.mxu0 0.0
      %831 = vmatprep.subr.mxu0 0.0
      %832 = vmatpush2.msra.mxu0 0.0
      %833 = vmatprep.mubr.f32.mxu0 0.0
      %834 = vmatmul.mubr.f32.gmra.mxu0 %v767
      %v835 = vpop.f32.mrf.mxu0
      %v836 = vadd.f32 0.0, %v835
      %v837 = vpop.f32.mrf.mxu0
      %838 = vdwg.mxu0
      %840 = vrot.lane.b32.xlu0 %v836, 24
      %v841 = vpop.permute.xlu0 %840
      %vm843 = vcmask 261312
      %844 = vst.msk [vmem:[%s152] sm:$0xff] %vm843, %v841
      %p845 = scmp.lt.s32.totalorder %s13, 1
      %s846 = scalar_select %p845, %s13, 1
      %s847 = smul.addr %s846, 8
      %s848 = scalar_lea.vmem %s2, %s847
      // Predicated region
      $region29: #{encoder_forward.12} parent=27 // pred_check
        %p849 = pneg %p83
      $region30: #{encoder_forward.12} parent=27 // pred_check_branch
        %851 = sbr.rel (%p849) target = $region32
      $region31: #{encoder_forward.12} parent=27 // pred_region
        _
      $region32: #{encoder_forward.12} parent=27 // pred_fallthru
        _
    $region28: #{encoder_forward.12} parent=5 // pred_fallthru
      _
    %p852 = scmp.le.s32.totalorder 2, %s8
    // Predicated region
    $region33: #{encoder_forward.12} parent=5 // pred_check
      %p853 = pneg %p852
    $region34: #{encoder_forward.12} parent=5 // pred_check_branch
      %855 = sbr.rel (%p853) target = $region36
    $region35: #{encoder_forward.12} parent=5 // pred_region
      %s856 = ssub.s32 %s8, 2
      // Predicated region
      $region37: #{encoder_forward.12} parent=35 // pred_check
        %p857 = pneg %p89
      $region38: #{encoder_forward.12} parent=35 // pred_check_branch
        %859 = sbr.rel (%p857) target = $region40
      $region39: #{encoder_forward.12} parent=35 // pred_region
        %p860 = scmp.lt.s32.totalorder %s14, 1
        %s861 = scalar_select %p860, %s14, 1
        %s862 = smul.addr %s861, 8
        %s863 = scalar_lea.vmem %s2, %s862
      $region40: #{encoder_forward.12} parent=35 // pred_fallthru
        _
    $region36: #{encoder_forward.12} parent=5 // pred_fallthru
      _
  $region6: #{encoder_forward.12} parent=0 // loop_footer
    %s12 = sadd.s32 1, %s8
  $region7: #{encoder_forward.12} parent=0 // loop_footer_branch
    %7 = sbr.rel target = $region3
  $region8: #{encoder_forward.12} parent=0 // loop_exit
    _

// kernel: encoder_forward.14
$region0: #{encoder_forward.14}
  #allocation0 [shape = 'u32[]', space=smem, size = 0x4, offset = 0x4, fixed_abs, tag = 'smem constant byte address 0x4 - core index']
  #allocation1 [shape = 'u32[144,128]{1,0:T(1,128)}', space=vmem, size = 0x12000, scoped, tag = 'internal scratch']
  %s0 = inlined_call_operand.vmem [shape: f32[16,32], index: 0, kind: input, shape index: {}]
  %s1 = inlined_call_operand.vmem [shape: f32[1,32], index: 1, kind: input, shape index: {}]
  %s2 = inlined_call_operand.vmem [shape: f32[1,32], index: 2, kind: input, shape index: {}]
  %s3 = inlined_call_operand.vmem [shape: f32[32,64], index: 3, kind: input, shape index: {}]
  %s4 = inlined_call_operand.vmem [shape: f32[1,64], index: 4, kind: input, shape index: {}]
  %s5 = inlined_call_operand.vmem [shape: f32[16,64], index: 5, kind: output, shape index: {}]
  %s6 = sld [smem:[#allocation0]]
  $region30: #{encoder_forward.14} parent=0
    _
  %s8 = ssub.s32 1, %s6
  %s9 = scalar_select 0, %s8, %s6
  // Predicated region
  $region2: #{encoder_forward.14} parent=0 // pred_check
    _
  $region3: #{encoder_forward.14} parent=0 // pred_check_branch
    %11 = sbr.rel (0) target = $region5
  $region4: #{encoder_forward.14} parent=0 // pred_region
    _
  $region5: #{encoder_forward.14} parent=0 // pred_fallthru
    _
  // Predicated region
  $region6: #{encoder_forward.14} parent=0 // pred_check
    _
  $region7: #{encoder_forward.14} parent=0 // pred_check_branch
    %13 = sbr.rel (0) target = $region9
  $region8: #{encoder_forward.14} parent=0 // pred_region
    _
  $region9: #{encoder_forward.14} parent=0 // pred_fallthru
    _
  // Predicated region
  $region10: #{encoder_forward.14} parent=0 // pred_check
    _
  $region11: #{encoder_forward.14} parent=0 // pred_check_branch
    %15 = sbr.rel (0) target = $region13
  $region12: #{encoder_forward.14} parent=0 // pred_region
    _
  $region13: #{encoder_forward.14} parent=0 // pred_fallthru
    _
  // Predicated region
  $region14: #{encoder_forward.14} parent=0 // pred_check
    _
  $region15: #{encoder_forward.14} parent=0 // pred_check_branch
    %17 = sbr.rel (0) target = $region17
  $region16: #{encoder_forward.14} parent=0 // pred_region
    _
  $region17: #{encoder_forward.14} parent=0 // pred_fallthru
    _
  // Predicated region
  $region18: #{encoder_forward.14} parent=0 // pred_check
    _
  $region19: #{encoder_forward.14} parent=0 // pred_check_branch
    %19 = sbr.rel (0) target = $region21
  $region20: #{encoder_forward.14} parent=0 // pred_region
    _
  $region21: #{encoder_forward.14} parent=0 // pred_fallthru
    _
  %v20 = vld [vmem:[%s0] sm:$0xff]
  %v21 = vld [vmem:[%s0 + $0x8] sm:$0xff]
  %vm22 = vcmask 261120
  %v23 = vsel %vm22, %v20, 0.0
  %24 = vadd.xlane.f32.xlu0 %v23
  %v25 = vpop.xlane.xlu0 %24
  %v26 = vsel %vm22, %v21, 0.0
  %27 = vadd.xlane.f32.xlu0 %v26
  %v28 = vpop.xlane.xlu0 %27
  %v29 = vrcp.pop 32.0
  %v30 = vmul.f32 %v25, %v29
  %v31 = vmul.f32 %v28, %v29
  %v32 = vsub.f32 %v20, %v30
  %v33 = vsub.f32 %v21, %v31
  %v34 = vmul.f32 %v32, %v32
  %v35 = vmul.f32 %v33, %v33
  %v36 = vsel %vm22, %v34, 0.0
  %37 = vadd.xlane.f32.xlu0 %v36
  %v38 = vpop.xlane.xlu0 %37
  %v39 = vsel %vm22, %v35, 0.0
  %40 = vadd.xlane.f32.xlu0 %v39
  %v41 = vpop.xlane.xlu0 %40
  %v42 = vmul.f32 %v38, 0.032258064
  %v43 = vmul.f32 %v41, 0.032258064
  %v44 = vrsqrt.pop %v42
  %v45 = vmul.f32 %v42, %v44
  %vm46 = vcmp.eq.f32.partialorder %v42, inf
  %v47 = vsel %vm46, %v42, %v45
  %vm48 = vcmp.eq.f32.partialorder %v42, 0.0
  %v49 = vand.u32 %v42, 2147483648
  %v50 = vsel %vm48, %v49, %v47
  %v51 = vrsqrt.pop %v43
  %v52 = vmul.f32 %v43, %v51
  %vm53 = vcmp.eq.f32.partialorder %v43, inf
  %v54 = vsel %vm53, %v43, %v52
  %vm55 = vcmp.eq.f32.partialorder %v43, 0.0
  %v56 = vand.u32 %v43, 2147483648
  %v57 = vsel %vm55, %v56, %v54
  %v58 = vadd.f32 %v50, 1e-06
  %v59 = vadd.f32 %v57, 1e-06
  %v60 = vrcp.pop %v58
  %v61 = vrcp.pop %v59
  %v62 = vld [vmem:[%s1] sm:$0x1]
  %v64 = vlaneseq
  %v65 = vshrl.u32 %v64, 7
  %v66 = vsub.s32 0, %v65
  %v67 = vrot.slane %v62, %v66
  %v69 = vmul.f32 %v67, %v32
  %v70 = vmul.f32 %v67, %v33
  %v71 = vmul.f32 %v69, %v60
  %v72 = vmul.f32 %v70, %v61
  %v73 = vld [vmem:[%s2] sm:$0x1]
  %v75 = vlaneseq
  %v76 = vshrl.u32 %v75, 7
  %v77 = vsub.s32 0, %v76
  %v78 = vrot.slane %v73, %v77
  %v80 = vadd.f32 %v71, %v78
  %v81 = vadd.f32 %v72, %v78
  %v82 = vld [vmem:[%s3] sm:$0xff]
  %v83 = vld [vmem:[%s3 + $0x8] sm:$0xff]
  %v84 = vld [vmem:[%s3 + $0x10] sm:$0xff]
  %v85 = vld [vmem:[%s3 + $0x18] sm:$0xff]
  %v86 = vld [vmem:[%s4] sm:$0x1]
  %v88 = vlaneseq
  %v89 = vshrl.u32 %v88, 7
  %v90 = vsub.s32 0, %v89
  %v91 = vrot.slane %v86, %v90
  %v94 = vsel %vm22, %v80, 0
  %v97 = vsel %vm22, %v81, 0
  %99 = vmatprep.subr.mxu0 0.0
  %100 = vmatpush1.msra.mxu0 0.0
  %101 = vmatprep.subr.mxu0 0.0
  %102 = vmatpush1.msra.mxu0 0.0
  %103 = vmatprep.subr.mxu0 0.0
  %104 = vmatpush1.msra.mxu0 0.0
  %105 = vmatprep.subr.mxu0 0.0
  %106 = vmatpush1.msra.mxu0 0.0
  %107 = vmatprep.subr.mxu0 0.0
  %108 = vmatpush1.msra.mxu0 0.0
  %109 = vmatprep.subr.mxu0 0.0
  %110 = vmatpush1.msra.mxu0 0.0
  %111 = vmatprep.subr.mxu0 0.0
  %112 = vmatpush1.msra.mxu0 0.0
  %113 = vmatprep.subr.mxu0 0.0
  %114 = vmatpush1.msra.mxu0 0.0
  %115 = vmatprep.subr.mxu0 0.0
  %116 = vmatpush1.msra.mxu0 0.0
  %117 = vmatprep.subr.mxu0 0.0
  %118 = vmatpush1.msra.mxu0 0.0
  %119 = vmatprep.subr.mxu0 0.0
  %120 = vmatpush1.msra.mxu0 0.0
  %121 = vmatprep.subr.mxu0 0.0
  %122 = vmatpush1.msra.mxu0 0.0
  %123 = vmatprep.subr.mxu0 0.0
  %124 = vmatpush1.msra.mxu0 %v85
  %125 = vmatprep.subr.mxu0 0.0
  %126 = vmatpush1.msra.mxu0 %v84
  %127 = vmatprep.subr.mxu0 0.0
  %128 = vmatpush1.msra.mxu0 %v83
  %129 = vmatprep.subr.mxu0 0.0
  %130 = vmatpush1.msra.mxu0 %v82
  %131 = vmatprep.subr.mxu0 0.0
  %132 = vmatpush2.msra.mxu0 0.0
  %133 = vmatprep.subr.mxu0 0.0
  %134 = vmatpush2.msra.mxu0 0.0
  %135 = vmatprep.subr.mxu0 0.0
  %136 = vmatpush2.msra.mxu0 0.0
  %137 = vmatprep.subr.mxu0 0.0
  %138 = vmatpush2.msra.mxu0 0.0
  %139 = vmatprep.subr.mxu0 0.0
  %140 = vmatpush2.msra.mxu0 0.0
  %141 = vmatprep.subr.mxu0 0.0
  %142 = vmatpush2.msra.mxu0 0.0
  %143 = vmatprep.subr.mxu0 0.0
  %144 = vmatpush2.msra.mxu0 0.0
  %145 = vmatprep.subr.mxu0 0.0
  %146 = vmatpush2.msra.mxu0 0.0
  %147 = vmatprep.subr.mxu0 0.0
  %148 = vmatpush2.msra.mxu0 0.0
  %149 = vmatprep.subr.mxu0 0.0
  %150 = vmatpush2.msra.mxu0 0.0
  %151 = vmatprep.subr.mxu0 0.0
  %152 = vmatpush2.msra.mxu0 0.0
  %153 = vmatprep.subr.mxu0 0.0
  %154 = vmatpush2.msra.mxu0 0.0
  %155 = vmatprep.subr.mxu0 0.0
  %156 = vmatpush2.msra.mxu0 0.0
  %157 = vmatprep.subr.mxu0 0.0
  %158 = vmatpush2.msra.mxu0 0.0
  %159 = vmatprep.subr.mxu0 0.0
  %160 = vmatpush2.msra.mxu0 0.0
  %161 = vmatprep.subr.mxu0 0.0
  %162 = vmatpush2.msra.mxu0 0.0
  %163 = vmatprep.mubr.f32.mxu0 0.0
  %164 = vmatmul.mubr.f32.gmra.mxu0 %v94
  %v165 = vpop.f32.mrf.mxu0
  %v166 = vadd.f32 %v91, %v165
  %v167 = vpop.f32.mrf.mxu0
  %168 = vmatprep.mubr.f32.mxu0 0.0
  %169 = vmatmul.mubr.f32.gmra.mxu0 %v97
  %v170 = vpop.f32.mrf.mxu0
  %v171 = vadd.f32 %v91, %v170
  %v172 = vpop.f32.mrf.mxu0
  %173 = vdwg.mxu0
  %v174 = vmax.f32 %v166, 0.0
  %v175 = vmax.f32 %v171, 0.0
  %vm176 = vcmask 523264
  %177 = vst.msk [vmem:[%s5] sm:$0xff] %vm176, %v174
  %178 = vst.msk [vmem:[%s5 + $0x8] sm:$0xff] %vm176, %v175
  // Predicated region
  $region22: #{encoder_forward.14} parent=0 // pred_check
    _
  $region23: #{encoder_forward.14} parent=0 // pred_check_branch
    %180 = sbr.rel (0) target = $region25
  $region24: #{encoder_forward.14} parent=0 // pred_region
    _
  $region25: #{encoder_forward.14} parent=0 // pred_fallthru
    _
  // Predicated region
  $region26: #{encoder_forward.14} parent=0 // pred_check
    _
  $region27: #{encoder_forward.14} parent=0 // pred_check_branch
    %182 = sbr.rel (0) target = $region29
  $region28: #{encoder_forward.14} parent=0 // pred_region
    _
  $region29: #{encoder_forward.14} parent=0 // pred_fallthru
    _

// kernel: encoder_forward.15
$region0: #{encoder_forward.15}
  #allocation0 [shape = 'u32[]', space=smem, size = 0x4, offset = 0x4, fixed_abs, tag = 'smem constant byte address 0x4 - core index']
  #allocation1 [shape = 'u32[144,128]{1,0:T(1,128)}', space=vmem, size = 0x12000, scoped, tag = 'internal scratch']
  #allocation2 [shape = 'f32[16,32]{1,0:T(8,128)}', space=vmem, size = 0x2000, scoped, tag = 'scratch operand']
  %s0 = inlined_call_operand.vmem [shape: f32[16,64], index: 0, kind: input, shape index: {}]
  %s1 = inlined_call_operand.vmem [shape: f32[64,32], index: 1, kind: input, shape index: {}]
  %s2 = inlined_call_operand.vmem [shape: f32[1,32], index: 2, kind: input, shape index: {}]
  %s3 = inlined_call_operand.vmem [shape: f32[16,32], index: 3, kind: input, shape index: {}]
  %s4 = inlined_call_operand.vmem [shape: f32[16,32], index: 4, kind: output, shape index: {}]
  %s5 = sld [smem:[#allocation0]]
  $region34: #{encoder_forward.15} parent=0
    _
  %s7 = ssub.s32 1, %s5
  %s8 = scalar_select 0, %s7, %s5
  // Predicated region
  $region2: #{encoder_forward.15} parent=0 // pred_check
    _
  $region3: #{encoder_forward.15} parent=0 // pred_check_branch
    %10 = sbr.rel (0) target = $region5
  $region4: #{encoder_forward.15} parent=0 // pred_region
    _
  $region5: #{encoder_forward.15} parent=0 // pred_fallthru
    _
  // Predicated region
  $region6: #{encoder_forward.15} parent=0 // pred_check
    _
  $region7: #{encoder_forward.15} parent=0 // pred_check_branch
    %12 = sbr.rel (0) target = $region9
  $region8: #{encoder_forward.15} parent=0 // pred_region
    _
  $region9: #{encoder_forward.15} parent=0 // pred_fallthru
    _
  // Predicated region
  $region10: #{encoder_forward.15} parent=0 // pred_check
    _
  $region11: #{encoder_forward.15} parent=0 // pred_check_branch
    %14 = sbr.rel (0) target = $region13
  $region12: #{encoder_forward.15} parent=0 // pred_region
    _
  $region13: #{encoder_forward.15} parent=0 // pred_fallthru
    _
  // Predicated region
  $region14: #{encoder_forward.15} parent=0 // pred_check
    _
  $region15: #{encoder_forward.15} parent=0 // pred_check_branch
    %16 = sbr.rel (0) target = $region17
  $region16: #{encoder_forward.15} parent=0 // pred_region
    _
  $region17: #{encoder_forward.15} parent=0 // pred_fallthru
    _
  %p17 = scmp.eq.s32.totalorder 0, 0
  // Predicated region
  $region18: #{encoder_forward.15} parent=0 // pred_check
    %p18 = pneg %p17
  $region19: #{encoder_forward.15} parent=0 // pred_check_branch
    %20 = sbr.rel (%p18) target = $region21
  $region20: #{encoder_forward.15} parent=0 // pred_region
    %vm21 = vcmask 261120
    %22 = vst.msk [vmem:[#allocation2] sm:$0xff] %vm21, 0.0
    %23 = vst.msk [vmem:[#allocation2 + $0x8] sm:$0xff] %vm21, 0.0
  $region21: #{encoder_forward.15} parent=0 // pred_fallthru
    _
  %v24 = vld [vmem:[#allocation2] sm:$0xff]
  %v25 = vld [vmem:[#allocation2 + $0x8] sm:$0xff]
  %v26 = vld [vmem:[%s0] sm:$0xff]
  %v27 = vld [vmem:[%s0 + $0x8] sm:$0xff]
  %v28 = vld [vmem:[%s1] sm:$0xff]
  %v29 = vld [vmem:[%s1 + $0x8] sm:$0xff]
  %v30 = vld [vmem:[%s1 + $0x10] sm:$0xff]
  %v31 = vld [vmem:[%s1 + $0x18] sm:$0xff]
  %v32 = vld [vmem:[%s1 + $0x20] sm:$0xff]
  %v33 = vld [vmem:[%s1 + $0x28] sm:$0xff]
  %v34 = vld [vmem:[%s1 + $0x30] sm:$0xff]
  %v35 = vld [vmem:[%s1 + $0x38] sm:$0xff]
  %vm36 = vcmask 523264
  %v38 = vsel %vm36, %v26, 0
  %v41 = vsel %vm36, %v27, 0
  %43 = vmatprep.subr.mxu0 0.0
  %44 = vmatpush1.msra.mxu0 0.0
  %45 = vmatprep.subr.mxu0 0.0
  %46 = vmatpush1.msra.mxu0 0.0
  %47 = vmatprep.subr.mxu0 0.0
  %48 = vmatpush1.msra.mxu0 0.0
  %49 = vmatprep.subr.mxu0 0.0
  %50 = vmatpush1.msra.mxu0 0.0
  %51 = vmatprep.subr.mxu0 0.0
  %52 = vmatpush1.msra.mxu0 0.0
  %53 = vmatprep.subr.mxu0 0.0
  %54 = vmatpush1.msra.mxu0 0.0
  %55 = vmatprep.subr.mxu0 0.0
  %56 = vmatpush1.msra.mxu0 0.0
  %57 = vmatprep.subr.mxu0 0.0
  %58 = vmatpush1.msra.mxu0 0.0
  %59 = vmatprep.subr.mxu0 0.0
  %60 = vmatpush1.msra.mxu0 %v35
  %61 = vmatprep.subr.mxu0 0.0
  %62 = vmatpush1.msra.mxu0 %v34
  %63 = vmatprep.subr.mxu0 0.0
  %64 = vmatpush1.msra.mxu0 %v33
  %65 = vmatprep.subr.mxu0 0.0
  %66 = vmatpush1.msra.mxu0 %v32
  %67 = vmatprep.subr.mxu0 0.0
  %68 = vmatpush1.msra.mxu0 %v31
  %69 = vmatprep.subr.mxu0 0.0
  %70 = vmatpush1.msra.mxu0 %v30
  %71 = vmatprep.subr.mxu0 0.0
  %72 = vmatpush1.msra.mxu0 %v29
  %73 = vmatprep.subr.mxu0 0.0
  %74 = vmatpush1.msra.mxu0 %v28
  %75 = vmatprep.subr.mxu0 0.0
  %76 = vmatpush2.msra.mxu0 0.0
  %77 = vmatprep.subr.mxu0 0.0
  %78 = vmatpush2.msra.mxu0 0.0
  %79 = vmatprep.subr.mxu0 0.0
  %80 = vmatpush2.msra.mxu0 0.0
  %81 = vmatprep.subr.mxu0 0.0
  %82 = vmatpush2.msra.mxu0 0.0
  %83 = vmatprep.subr.mxu0 0.0
  %84 = vmatpush2.msra.mxu0 0.0
  %85 = vmatprep.subr.mxu0 0.0
  %86 = vmatpush2.msra.mxu0 0.0
  %87 = vmatprep.subr.mxu0 0.0
  %88 = vmatpush2.msra.mxu0 0.0
  %89 = vmatprep.subr.mxu0 0.0
  %90 = vmatpush2.msra.mxu0 0.0
  %91 = vmatprep.subr.mxu0 0.0
  %92 = vmatpush2.msra.mxu0 0.0
  %93 = vmatprep.subr.mxu0 0.0
  %94 = vmatpush2.msra.mxu0 0.0
  %95 = vmatprep.subr.mxu0 0.0
  %96 = vmatpush2.msra.mxu0 0.0
  %97 = vmatprep.subr.mxu0 0.0
  %98 = vmatpush2.msra.mxu0 0.0
  %99 = vmatprep.subr.mxu0 0.0
  %100 = vmatpush2.msra.mxu0 0.0
  %101 = vmatprep.subr.mxu0 0.0
  %102 = vmatpush2.msra.mxu0 0.0
  %103 = vmatprep.subr.mxu0 0.0
  %104 = vmatpush2.msra.mxu0 0.0
  %105 = vmatprep.subr.mxu0 0.0
  %106 = vmatpush2.msra.mxu0 0.0
  %107 = vmatprep.mubr.f32.mxu0 0.0
  %108 = vmatmul.mubr.f32.gmra.mxu0 %v38
  %v109 = vpop.f32.mrf.mxu0
  %v110 = vadd.f32 0.0, %v109
  %v111 = vpop.f32.mrf.mxu0
  %112 = vmatprep.mubr.f32.mxu0 0.0
  %113 = vmatmul.mubr.f32.gmra.mxu0 %v41
  %v114 = vpop.f32.mrf.mxu0
  %v115 = vadd.f32 0.0, %v114
  %v116 = vpop.f32.mrf.mxu0
  %117 = vdwg.mxu0
  %v118 = vadd.f32 %v24, %v110
  %v119 = vadd.f32 %v25, %v115
  %vm120 = vcmask 261120
  %121 = vst.msk [vmem:[#allocation2] sm:$0xff] %vm120, %v118
  %122 = vst.msk [vmem:[#allocation2 + $0x8] sm:$0xff] %vm120, %v119
  // Predicated region
  $region22: #{encoder_forward.15} parent=0 // pred_check
    %p123 = pneg %p17
  $region23: #{encoder_forward.15} parent=0 // pred_check_branch
    %125 = sbr.rel (%p123) target = $region25
  $region24: #{encoder_forward.15} parent=0 // pred_region
    %v126 = vld [vmem:[#allocation2] sm:$0xff]
    %v127 = vld [vmem:[#allocation2 + $0x8] sm:$0xff]
    %v128 = vld [vmem:[%s2] sm:$0x1]
    %v130 = vlaneseq
    %v131 = vshrl.u32 %v130, 7
    %v132 = vsub.s32 0, %v131
    %v133 = vrot.slane %v128, %v132
    %v135 = vadd.f32 %v126, %v133
    %v136 = vadd.f32 %v127, %v133
    %v137 = vld [vmem:[%s3] sm:$0xff]
    %v138 = vld [vmem:[%s3 + $0x8] sm:$0xff]
    %v139 = vadd.f32 %v135, %v137
    %v140 = vadd.f32 %v136, %v138
    %141 = vst.msk [vmem:[%s4] sm:$0xff] %vm120, %v139
    %142 = vst.msk [vmem:[%s4 + $0x8] sm:$0xff] %vm120, %v140
  $region25: #{encoder_forward.15} parent=0 // pred_fallthru
    _
  // Predicated region
  $region26: #{encoder_forward.15} parent=0 // pred_check
    _
  $region27: #{encoder_forward.15} parent=0 // pred_check_branch
    %144 = sbr.rel (0) target = $region29
  $region28: #{encoder_forward.15} parent=0 // pred_region
    _
  $region29: #{encoder_forward.15} parent=0 // pred_fallthru
    _
  // Predicated region
  $region30: #{encoder_forward.15} parent=0 // pred_check
    _
  $region31: #{encoder_forward.15} parent=0 // pred_check_branch
    %146 = sbr.rel (0) target = $region33
  $region32: #{encoder_forward.15} parent=0 // pred_region
    _
  $region33: #{encoder_forward.15} parent=0 // pred_fallthru
    _

// kernel: encoder_forward.21
$region0: #{encoder_forward.21}
  #allocation0 [shape = 'u32[]', space=smem, size = 0x4, offset = 0x4, fixed_abs, tag = 'smem constant byte address 0x4 - core index']
  #allocation1 [shape = 'u32[144,128]{1,0:T(1,128)}', space=vmem, size = 0x12000, scoped, tag = 'internal scratch']
  %s0 = inlined_call_operand.vmem [shape: f32[16,32], index: 0, kind: input, shape index: {}]
  %s1 = inlined_call_operand.vmem [shape: f32[1,32], index: 1, kind: input, shape index: {}]
  %s2 = inlined_call_operand.vmem [shape: f32[1,32], index: 2, kind: input, shape index: {}]
  %s3 = inlined_call_operand.hbm [shape: f32[16,32], index: 3, kind: output, shape index: {}]
  %s4 = sld [smem:[#allocation0]]
  $region22: #{encoder_forward.21} parent=0
    _
  %s6 = ssub.s32 1, %s4
  %s7 = scalar_select 0, %s6, %s4
  $region1: #{encoder_forward.21} parent=0
    #allocation2 [shape = 'u8[8192]{0}', space=vmem, size = 0x2000, scoped, tag = 'output window, operand 0, single buffered']
    #allocation3 [shape = 's32[1]{0}', space=sflag, size = 0x4, scoped, tag = 'scoped memory for encoder_forward.21']
    %8 = vsyncpa [#allocation3], 0
    // Predicated region
    $region2: #{encoder_forward.21} parent=1 // pred_check
      _
    $region3: #{encoder_forward.21} parent=1 // pred_check_branch
      %10 = sbr.rel (0) target = $region5
    $region4: #{encoder_forward.21} parent=1 // pred_region
      _
    $region5: #{encoder_forward.21} parent=1 // pred_fallthru
      _
    // Predicated region
    $region6: #{encoder_forward.21} parent=1 // pred_check
      _
    $region7: #{encoder_forward.21} parent=1 // pred_check_branch
      %12 = sbr.rel (0) target = $region9
    $region8: #{encoder_forward.21} parent=1 // pred_region
      _
    $region9: #{encoder_forward.21} parent=1 // pred_fallthru
      _
    // Predicated region
    $region10: #{encoder_forward.21} parent=1 // pred_check
      _
    $region11: #{encoder_forward.21} parent=1 // pred_check_branch
      %14 = sbr.rel (0) target = $region13
    $region12: #{encoder_forward.21} parent=1 // pred_region
      _
    $region13: #{encoder_forward.21} parent=1 // pred_fallthru
      _
    %v15 = vld [vmem:[%s0] sm:$0xff]
    %v16 = vld [vmem:[%s0 + $0x8] sm:$0xff]
    %vm17 = vcmask 261120
    %v18 = vsel %vm17, %v15, 0.0
    %19 = vadd.xlane.f32.xlu0 %v18
    %v20 = vpop.xlane.xlu0 %19
    %v21 = vsel %vm17, %v16, 0.0
    %22 = vadd.xlane.f32.xlu0 %v21
    %v23 = vpop.xlane.xlu0 %22
    %v24 = vrcp.pop 32.0
    %v25 = vmul.f32 %v20, %v24
    %v26 = vmul.f32 %v23, %v24
    %v27 = vsub.f32 %v15, %v25
    %v28 = vsub.f32 %v16, %v26
    %v29 = vmul.f32 %v27, %v27
    %v30 = vmul.f32 %v28, %v28
    %v31 = vsel %vm17, %v29, 0.0
    %32 = vadd.xlane.f32.xlu0 %v31
    %v33 = vpop.xlane.xlu0 %32
    %v34 = vsel %vm17, %v30, 0.0
    %35 = vadd.xlane.f32.xlu0 %v34
    %v36 = vpop.xlane.xlu0 %35
    %v37 = vmul.f32 %v33, 0.032258064
    %v38 = vmul.f32 %v36, 0.032258064
    %v39 = vrsqrt.pop %v37
    %v40 = vmul.f32 %v37, %v39
    %vm41 = vcmp.eq.f32.partialorder %v37, inf
    %v42 = vsel %vm41, %v37, %v40
    %vm43 = vcmp.eq.f32.partialorder %v37, 0.0
    %v44 = vand.u32 %v37, 2147483648
    %v45 = vsel %vm43, %v44, %v42
    %v46 = vrsqrt.pop %v38
    %v47 = vmul.f32 %v38, %v46
    %vm48 = vcmp.eq.f32.partialorder %v38, inf
    %v49 = vsel %vm48, %v38, %v47
    %vm50 = vcmp.eq.f32.partialorder %v38, 0.0
    %v51 = vand.u32 %v38, 2147483648
    %v52 = vsel %vm50, %v51, %v49
    %v53 = vadd.f32 %v45, 1e-06
    %v54 = vadd.f32 %v52, 1e-06
    %v55 = vrcp.pop %v53
    %v56 = vrcp.pop %v54
    %v57 = vld [vmem:[%s1] sm:$0x1]
    %v59 = vlaneseq
    %v60 = vshrl.u32 %v59, 7
    %v61 = vsub.s32 0, %v60
    %v62 = vrot.slane %v57, %v61
    %v64 = vmul.f32 %v62, %v27
    %v65 = vmul.f32 %v62, %v28
    %v66 = vmul.f32 %v64, %v55
    %v67 = vmul.f32 %v65, %v56
    %v68 = vld [vmem:[%s2] sm:$0x1]
    %v70 = vlaneseq
    %v71 = vshrl.u32 %v70, 7
    %v72 = vsub.s32 0, %v71
    %v73 = vrot.slane %v68, %v72
    %v75 = vadd.f32 %v66, %v73
    %v76 = vadd.f32 %v67, %v73
    %77 = vst.msk [vmem:[#allocation2] sm:$0xff] %vm17, %v75
    %78 = vst.msk [vmem:[#allocation2 + $0x8] sm:$0xff] %vm17, %v76
    // Predicated region
    $region14: #{encoder_forward.21} parent=1 // pred_check
      _
    $region15: #{encoder_forward.21} parent=1 // pred_check_branch
      %80 = sbr.rel (0) target = $region17
    $region16: #{encoder_forward.21} parent=1 // pred_region
      %s82 = ssub.s32 256, 256
      %83 = vsyncadd [#allocation3], %s82
      %s84 = sshll.u32 [#allocation2], 4
      %s85 = int_to_ptr.vmem [resolvable:$true] %s84
      %90 = dma.vmem_to_hbm [thread:$0]  %s85, 256, %s3, [#allocation3], 128, 128, 8
    $region17: #{encoder_forward.21} parent=1 // pred_fallthru
      _
    // Predicated region
    $region18: #{encoder_forward.21} parent=1 // pred_check
      _
    $region19: #{encoder_forward.21} parent=1 // pred_check_branch
      %92 = sbr.rel (0) target = $region21
    $region20: #{encoder_forward.21} parent=1 // pred_region
      %93 = dma.done [#allocation3], 256
    $region21: #{encoder_forward.21} parent=1 // pred_fallthru
      _
    %94 = vsyncpa [#allocation3], 1

</llo_original>
